<compile_context>
chip_gen: v6e
topology: v6e:2x2x1
jax: 0.10.0
libtpu: 0.0.40
codegen_flags: <defaults>
</compile_context>

<pallas_src>
import functools

import jax
import jax.numpy as jnp
from jax.experimental import pallas as pl
from jax.experimental.pallas import tpu as pltpu

LEAKY_SLOPE = 0.2
GN_EPS = 1e-5
_FEAT = 128                 # channel width of mlp1 / mlp2 outputs (fi & pooled)
_DEFAULT_TILE_N = 1024      # point-tile rows; fits VMEM on v5e / v6e / v7x


def _round_up(x, m):
    return ((x + m - 1) // m) * m


# ----------------------------------------------------------------------------
# In-kernel building block: Linear -> LeakyReLU(0.2) -> GroupNorm
# ----------------------------------------------------------------------------
def _mlp_block(h, w_ref, b_ref, gamma_ref, beta_ref, mg_ref, mt_ref):
    """h: (T, Cin) bf16  ->  (T, Cout) bf16."""
    # Linear (bf16 MXU operands, f32 accumulate) + LeakyReLU in f32.
    y = jnp.dot(h, w_ref[...], preferred_element_type=jnp.float32) + b_ref[...]
    y = jnp.where(y >= 0.0, y, LEAKY_SLOPE * y)

    # GroupNorm: per-row, per-group stats via membership matmuls.
    #   mg = onehot(C, G) / group_size   (precomputed)
    #   mt = onehot(C, G).T              (precomputed)
    # mean and mean-of-squares share one matmul pair by stacking [y; y*y].
    t = y.shape[0]
    yy = jnp.concatenate([y, y * y], axis=0)                               # (2T, C)
    g_stats = jnp.dot(yy, mg_ref[...], preferred_element_type=jnp.float32)       # (2T, G)
    c_stats = jnp.dot(g_stats, mt_ref[...], preferred_element_type=jnp.float32)  # (2T, C)
    mean_c = c_stats[:t]
    var_c = c_stats[t:] - mean_c * mean_c          # biased variance (torch GroupNorm)
    y = (y - mean_c) * jax.lax.rsqrt(var_c + GN_EPS)
    y = y * gamma_ref[...] + beta_ref[...]
    return y.astype(jnp.bfloat16)


# ----------------------------------------------------------------------------
# Pass A kernel: mlp1 + mlp2 for one point tile -> fi + masked per-tile max
# ----------------------------------------------------------------------------
def _pass_a_kernel(*refs, n_valid, tile_n, nb1, nb2):
    x_ref = refs[0]
    fi_ref, max_ref = refs[-2], refs[-1]
    prefs = refs[1:-2]

    h = x_ref[...]                                                    # (TN, Cin) bf16
    k = 0
    for _ in range(nb1):
        h = _mlp_block(h, *prefs[k:k + 6])
        k += 6
    fi_ref[...] = h                                                   # fi (bf16)
    for _ in range(nb2):
        h = _mlp_block(h, *prefs[k:k + 6])
        k += 6

    # Per-tile max over valid rows only (padded rows masked to -float32.max).
    h32 = h.astype(jnp.float32)
    row = (jax.lax.broadcasted_iota(jnp.int32, (tile_n, 1), 0)
           + pl.program_id(0) * tile_n)
    h32 = jnp.where(row < n_valid, h32, jnp.finfo(jnp.float32).min)
    tmax = jnp.max(h32, axis=0, keepdims=True)                        # (1, 128)
    max_ref[...] = jnp.broadcast_to(tmax, (8, tmax.shape[-1]))


# ----------------------------------------------------------------------------
# Pass B kernel: broadcast global max + concat + mlp3 + final Linear
# ----------------------------------------------------------------------------
def _pass_b_kernel(*refs, nb3, tile_n):
    gmax_ref, fi_ref = refs[0], refs[1]
    lin_w_ref, lin_b_ref, out_ref = refs[-3], refs[-2], refs[-1]
    prefs = refs[2:-3]

    pooled = jnp.broadcast_to(gmax_ref[...], (tile_n, gmax_ref.shape[-1]))  # bf16
    h = jnp.concatenate([pooled, fi_ref[...]], axis=1)                # (TN, 256) bf16
    k = 0
    for _ in range(nb3):
        h = _mlp_block(h, *prefs[k:k + 6])
        k += 6
    out_ref[...] = (jnp.dot(h, lin_w_ref[...], preferred_element_type=jnp.float32)
                    + lin_b_ref[...])


# ----------------------------------------------------------------------------
# Forward wrapper: two pallas_calls + a tiny JAX max-reduce in between.
# ----------------------------------------------------------------------------
def pointnet_forward(x, params, tile_n=_DEFAULT_TILE_N):
    n, cin = x.shape
    tn = _round_up(min(int(tile_n), _round_up(n, 8)), 8)
    n_pad = _round_up(n, tn)
    num_tiles = n_pad // tn

    x_p = jnp.zeros((n_pad, cin), jnp.bfloat16).at[:n, :].set(x.astype(jnp.bfloat16))

    blocks_a = list(params["mlp1"]) + list(params["mlp2"])
    blocks_b = list(params["mlp3"])
    flat_a = [p for blk in blocks_a for p in blk]
    flat_b = [p for blk in blocks_b for p in blk]

    def full_spec(p):
        # Full-array block with a constant index_map -> stays resident in VMEM.
        return pl.BlockSpec(p.shape, lambda i: (0,) * p.ndim)

    cparams = pltpu.CompilerParams(
        dimension_semantics=("parallel",),
        vmem_limit_bytes=32 * 1024 * 1024,
    )

    # ---- Pass A: mlp1 + mlp2 -> fi, per-tile partial max --------------------
    fi, tile_max = pl.pallas_call(
        functools.partial(_pass_a_kernel, n_valid=n, tile_n=tn,
                          nb1=len(params["mlp1"]), nb2=len(params["mlp2"])),
        grid=(num_tiles,),
        in_specs=[pl.BlockSpec((tn, cin), lambda i: (i, 0))]
                 + [full_spec(p) for p in flat_a],
        out_specs=(pl.BlockSpec((tn, _FEAT), lambda i: (i, 0)),
                   pl.BlockSpec((8, _FEAT), lambda i: (i, 0))),
        out_shape=(jax.ShapeDtypeStruct((n_pad, _FEAT), jnp.bfloat16),
                   jax.ShapeDtypeStruct((num_tiles * 8, _FEAT), jnp.float32)),
        compiler_params=cparams,
    )(x_p, *flat_a)

    # Global max-pool over points (tiny: num_tiles*8 x 128, plain JAX).
    gmax = jnp.max(tile_max, axis=0, keepdims=True).astype(jnp.bfloat16)   # (1, 128)

    # ---- Pass B: concat(max, fi) -> mlp3 -> lin1 ----------------------------
    cout_pad = params["lin_w"].shape[1]
    out = pl.pallas_call(
        functools.partial(_pass_b_kernel, nb3=len(blocks_b), tile_n=tn),
        grid=(num_tiles,),
        in_specs=[full_spec(gmax),
                  pl.BlockSpec((tn, _FEAT), lambda i: (i, 0))]
                 + [full_spec(p) for p in flat_b]
                 + [full_spec(params["lin_w"]), full_spec(params["lin_b"])],
        out_specs=pl.BlockSpec((tn, cout_pad), lambda i: (i, 0)),
        out_shape=jax.ShapeDtypeStruct((n_pad, cout_pad), jnp.float32),
        compiler_params=cparams,
    )(gmax, fi, *flat_b, params["lin_w"], params["lin_b"])

    return out[:n, :params["cout"]]


# ----------------------------------------------------------------------------
# Parameter construction (deterministic, synthetic)
# ----------------------------------------------------------------------------
def _num_groups(c):
    return c // 32 if c >= 32 else 1


def _make_block_params(key, cin, cout):
    k1, k2, k3, k4 = jax.random.split(key, 4)
    w = (jax.random.normal(k1, (cin, cout), jnp.float32)
         / jnp.sqrt(float(cin))).astype(jnp.bfloat16)
    b = 0.1 * jax.random.normal(k2, (1, cout), jnp.float32)
    gamma = 1.0 + 0.1 * jax.random.normal(k3, (1, cout), jnp.float32)
    beta = 0.1 * jax.random.normal(k4, (1, cout), jnp.float32)
    g = _num_groups(cout)
    s = cout // g
    onehot = (jnp.arange(cout)[:, None] // s
              == jnp.arange(g)[None, :]).astype(jnp.float32)          # (C, G)
    mg = onehot / float(s)                                            # mean weights
    mt = onehot.T                                                     # (G, C)
    return (w, b, gamma, beta, mg, mt)


def _make_mlp_params(key, channels):
    blocks = []
    for i in range(1, len(channels)):
        key, sub = jax.random.split(key)
        blocks.append(_make_block_params(sub, channels[i - 1], channels[i]))
    return key, blocks


def init_pointnet_params(key, num_input_features, num_output_features):
    key, mlp1 = _make_mlp_params(key, [num_input_features, 32, 64, 128])
    key, mlp2 = _make_mlp_params(key, [128, 128])
    key, mlp3 = _make_mlp_params(key, [256, 128, 64])
    key, k1, k2 = jax.random.split(key, 3)
    cout_pad = _round_up(num_output_features, 128)
    lin_w = jnp.zeros((64, cout_pad), jnp.float32).at[:, :num_output_features].set(
        jax.random.normal(k1, (64, num_output_features), jnp.float32) / 8.0)
    lin_b = jnp.zeros((1, cout_pad), jnp.float32).at[:, :num_output_features].set(
        0.1 * jax.random.normal(k2, (1, num_output_features), jnp.float32))
    return {"mlp1": mlp1, "mlp2": mlp2, "mlp3": mlp3,
            "lin_w": lin_w.astype(jnp.bfloat16), "lin_b": lin_b,
            "cout": num_output_features}


# ----------------------------------------------------------------------------
# Pure-JAX reference (mirrors the kernel's bf16/f32 dtype boundaries)
# ----------------------------------------------------------------------------
def _mlp_block_ref(h, w, b, gamma, beta, mg, mt):
    y = jnp.dot(h, w, preferred_element_type=jnp.float32) + b
    y = jnp.where(y >= 0.0, y, LEAKY_SLOPE * y)
    n, c = y.shape
    g = mg.shape[1]
    yg = y.reshape(n, g, c // g)
    mean = yg.mean(axis=2, keepdims=True)
    var = yg.var(axis=2, keepdims=True)
    yg = (yg - mean) * jax.lax.rsqrt(var + GN_EPS)
    y = yg.reshape(n, c) * gamma + beta
    return y.astype(jnp.bfloat16)


def pointnet_forward_ref(x, params):
    h = x.astype(jnp.bfloat16)
    for blk in params["mlp1"]:
        h = _mlp_block_ref(h, *blk)
    fi = h
    for blk in params["mlp2"]:
        h = _mlp_block_ref(h, *blk)
    gmax = jnp.max(h.astype(jnp.float32), axis=0, keepdims=True).astype(jnp.bfloat16)
    h = jnp.concatenate([jnp.broadcast_to(gmax, fi.shape), fi], axis=1)
    for blk in params["mlp3"]:
        h = _mlp_block_ref(h, *blk)
    out = jnp.dot(h, params["lin_w"], preferred_element_type=jnp.float32) + params["lin_b"]
    return out[:, :params["cout"]]


# ----------------------------------------------------------------------------
if __name__ == "__main__":
    num_points = 100
    num_input_features = 4
    num_output_features = 16

    key = jax.random.PRNGKey(0)
    key, kx = jax.random.split(key)
    x = jax.random.normal(kx, (num_points, num_input_features), jnp.float32)
    params = init_pointnet_params(key, num_input_features, num_output_features)

    # Small tile so the demo exercises the multi-tile grid + row-masking path.
    out = jax.block_until_ready(pointnet_forward(x, params, tile_n=32))
    ref = jax.block_until_ready(pointnet_forward_ref(x, params))

    assert out.shape == (num_points, num_output_features), out.shape
    err = float(jnp.max(jnp.abs(out - ref)))
    assert jnp.allclose(out, ref, rtol=5e-2, atol=5e-2), f"max abs err {err}"
    print("KERNEL_OK")
</pallas_src>

<mosaic_0001>
module attributes {stable_mosaic.version = 11 : i64} {
  func.func @_pass_a_kernel(%arg0: i32, %arg1: memref<32x4xbf16, #tpu.memory_space<vmem>>, %arg2: memref<4x32xbf16, #tpu.memory_space<vmem>>, %arg3: memref<1x32xf32, #tpu.memory_space<vmem>>, %arg4: memref<1x32xf32, #tpu.memory_space<vmem>>, %arg5: memref<1x32xf32, #tpu.memory_space<vmem>>, %arg6: memref<32x1xf32, #tpu.memory_space<vmem>>, %arg7: memref<1x32xf32, #tpu.memory_space<vmem>>, %arg8: memref<32x64xbf16, #tpu.memory_space<vmem>>, %arg9: memref<1x64xf32, #tpu.memory_space<vmem>>, %arg10: memref<1x64xf32, #tpu.memory_space<vmem>>, %arg11: memref<1x64xf32, #tpu.memory_space<vmem>>, %arg12: memref<64x2xf32, #tpu.memory_space<vmem>>, %arg13: memref<2x64xf32, #tpu.memory_space<vmem>>, %arg14: memref<64x128xbf16, #tpu.memory_space<vmem>>, %arg15: memref<1x128xf32, #tpu.memory_space<vmem>>, %arg16: memref<1x128xf32, #tpu.memory_space<vmem>>, %arg17: memref<1x128xf32, #tpu.memory_space<vmem>>, %arg18: memref<128x4xf32, #tpu.memory_space<vmem>>, %arg19: memref<4x128xf32, #tpu.memory_space<vmem>>, %arg20: memref<128x128xbf16, #tpu.memory_space<vmem>>, %arg21: memref<1x128xf32, #tpu.memory_space<vmem>>, %arg22: memref<1x128xf32, #tpu.memory_space<vmem>>, %arg23: memref<1x128xf32, #tpu.memory_space<vmem>>, %arg24: memref<128x4xf32, #tpu.memory_space<vmem>>, %arg25: memref<4x128xf32, #tpu.memory_space<vmem>>, %arg26: memref<32x128xbf16, #tpu.memory_space<vmem>>, %arg27: memref<8x128xf32, #tpu.memory_space<vmem>>) attributes {dimension_semantics = [#tpu.dimension_semantics<parallel>], iteration_bounds = array<i64: 4>, scalar_prefetch = 0 : i64, scratch_operands = 0 : i64, tpu.core_type = #tpu.core_type<tc>, window_params = [{transform_indices = @transform_0, window_bounds = array<i64: 32, 4>}, {pipeline_mode = #tpu.pipeline_mode<synchronous>, transform_indices = @transform_1, window_bounds = array<i64: 4, 32>}, {pipeline_mode = #tpu.pipeline_mode<synchronous>, transform_indices = @transform_2, window_bounds = array<i64: 1, 32>}, {pipeline_mode = #tpu.pipeline_mode<synchronous>, transform_indices = @transform_3, window_bounds = array<i64: 1, 32>}, {pipeline_mode = #tpu.pipeline_mode<synchronous>, transform_indices = @transform_4, window_bounds = array<i64: 1, 32>}, {pipeline_mode = #tpu.pipeline_mode<synchronous>, transform_indices = @transform_5, window_bounds = array<i64: 32, 1>}, {pipeline_mode = #tpu.pipeline_mode<synchronous>, transform_indices = @transform_6, window_bounds = array<i64: 1, 32>}, {pipeline_mode = #tpu.pipeline_mode<synchronous>, transform_indices = @transform_7, window_bounds = array<i64: 32, 64>}, {pipeline_mode = #tpu.pipeline_mode<synchronous>, transform_indices = @transform_8, window_bounds = array<i64: 1, 64>}, {pipeline_mode = #tpu.pipeline_mode<synchronous>, transform_indices = @transform_9, window_bounds = array<i64: 1, 64>}, {pipeline_mode = #tpu.pipeline_mode<synchronous>, transform_indices = @transform_10, window_bounds = array<i64: 1, 64>}, {pipeline_mode = #tpu.pipeline_mode<synchronous>, transform_indices = @transform_11, window_bounds = array<i64: 64, 2>}, {pipeline_mode = #tpu.pipeline_mode<synchronous>, transform_indices = @transform_12, window_bounds = array<i64: 2, 64>}, {pipeline_mode = #tpu.pipeline_mode<synchronous>, transform_indices = @transform_13, window_bounds = array<i64: 64, 128>}, {pipeline_mode = #tpu.pipeline_mode<synchronous>, transform_indices = @transform_14, window_bounds = array<i64: 1, 128>}, {pipeline_mode = #tpu.pipeline_mode<synchronous>, transform_indices = @transform_15, window_bounds = array<i64: 1, 128>}, {pipeline_mode = #tpu.pipeline_mode<synchronous>, transform_indices = @transform_16, window_bounds = array<i64: 1, 128>}, {pipeline_mode = #tpu.pipeline_mode<synchronous>, transform_indices = @transform_17, window_bounds = array<i64: 128, 4>}, {pipeline_mode = #tpu.pipeline_mode<synchronous>, transform_indices = @transform_18, window_bounds = array<i64: 4, 128>}, {pipeline_mode = #tpu.pipeline_mode<synchronous>, transform_indices = @transform_19, window_bounds = array<i64: 128, 128>}, {pipeline_mode = #tpu.pipeline_mode<synchronous>, transform_indices = @transform_20, window_bounds = array<i64: 1, 128>}, {pipeline_mode = #tpu.pipeline_mode<synchronous>, transform_indices = @transform_21, window_bounds = array<i64: 1, 128>}, {pipeline_mode = #tpu.pipeline_mode<synchronous>, transform_indices = @transform_22, window_bounds = array<i64: 1, 128>}, {pipeline_mode = #tpu.pipeline_mode<synchronous>, transform_indices = @transform_23, window_bounds = array<i64: 128, 4>}, {pipeline_mode = #tpu.pipeline_mode<synchronous>, transform_indices = @transform_24, window_bounds = array<i64: 4, 128>}, {transform_indices = @transform_25, window_bounds = array<i64: 32, 128>}, {transform_indices = @transform_26, window_bounds = array<i64: 8, 128>}]} {
    %c0 = arith.constant 0 : index
    %c0_0 = arith.constant 0 : index
    %0 = vector.load %arg1[%c0, %c0_0] : memref<32x4xbf16, #tpu.memory_space<vmem>>, vector<32x4xbf16>
    %c0_1 = arith.constant 0 : index
    %c0_2 = arith.constant 0 : index
    %1 = vector.load %arg2[%c0_1, %c0_2] : memref<4x32xbf16, #tpu.memory_space<vmem>>, vector<4x32xbf16>
    %cst = arith.constant dense<0.000000e+00> : vector<32x32xf32>
    %2 = tpu.matmul %0, %1, %cst {dimension_numbers = #tpu.dot_dimension_numbers<[1], [0], [0], [1], [0, 0, 1, 1], [], []>} : vector<32x4xbf16>, vector<4x32xbf16>, vector<32x32xf32> -> vector<32x32xf32>
    %c0_3 = arith.constant 0 : index
    %c0_4 = arith.constant 0 : index
    %3 = vector.load %arg3[%c0_3, %c0_4] : memref<1x32xf32, #tpu.memory_space<vmem>>, vector<1x32xf32>
    %4 = vector.broadcast %3 : vector<1x32xf32> to vector<32x32xf32>
    %5 = arith.addf %2, %4 : vector<32x32xf32>
    %cst_5 = arith.constant 0.000000e+00 : f32
    %6 = vector.broadcast %cst_5 : f32 to vector<32x32xf32>
    %7 = arith.cmpf oge, %5, %6 : vector<32x32xf32>
    %cst_6 = arith.constant 2.000000e-01 : f32
    %8 = vector.broadcast %cst_6 : f32 to vector<32x32xf32>
    %9 = arith.mulf %8, %5 : vector<32x32xf32>
    %10 = arith.select %7, %5, %9 : vector<32x32xi1>, vector<32x32xf32>
    %11 = arith.mulf %10, %10 : vector<32x32xf32>
    %12 = tpu.concatenate %10, %11 in 0 : vector<32x32xf32>, vector<32x32xf32> -> vector<64x32xf32>
    %c0_7 = arith.constant 0 : index
    %c0_8 = arith.constant 0 : index
    %13 = vector.load %arg6[%c0_7, %c0_8] : memref<32x1xf32, #tpu.memory_space<vmem>>, vector<32x1xf32>
    %cst_9 = arith.constant dense<0.000000e+00> : vector<64x1xf32>
    %14 = tpu.matmul %12, %13, %cst_9 {dimension_numbers = #tpu.dot_dimension_numbers<[1], [0], [0], [1], [0, 0, 1, 1], [], []>} : vector<64x32xf32>, vector<32x1xf32>, vector<64x1xf32> -> vector<64x1xf32>
    %c0_10 = arith.constant 0 : index
    %c0_11 = arith.constant 0 : index
    %15 = vector.load %arg7[%c0_10, %c0_11] : memref<1x32xf32, #tpu.memory_space<vmem>>, vector<1x32xf32>
    %cst_12 = arith.constant dense<0.000000e+00> : vector<64x32xf32>
    %16 = tpu.matmul %14, %15, %cst_12 {dimension_numbers = #tpu.dot_dimension_numbers<[1], [0], [0], [1], [0, 0, 1, 1], [], []>} : vector<64x1xf32>, vector<1x32xf32>, vector<64x32xf32> -> vector<64x32xf32>
    %17 = vector.extract_strided_slice %16 {offsets = [0, 0], sizes = [32, 32], strides = [1, 1]} : vector<64x32xf32> to vector<32x32xf32>
    %18 = vector.extract_strided_slice %16 {offsets = [32, 0], sizes = [32, 32], strides = [1, 1]} : vector<64x32xf32> to vector<32x32xf32>
    %19 = arith.mulf %17, %17 : vector<32x32xf32>
    %20 = arith.subf %18, %19 : vector<32x32xf32>
    %21 = arith.subf %10, %17 : vector<32x32xf32>
    %cst_13 = arith.constant 9.99999974E-6 : f32
    %22 = vector.broadcast %cst_13 : f32 to vector<32x32xf32>
    %23 = arith.addf %20, %22 : vector<32x32xf32>
    %24 = math.rsqrt %23 : vector<32x32xf32>
    %25 = arith.mulf %21, %24 : vector<32x32xf32>
    %c0_14 = arith.constant 0 : index
    %c0_15 = arith.constant 0 : index
    %26 = vector.load %arg4[%c0_14, %c0_15] : memref<1x32xf32, #tpu.memory_space<vmem>>, vector<1x32xf32>
    %27 = vector.broadcast %26 : vector<1x32xf32> to vector<32x32xf32>
    %28 = arith.mulf %25, %27 : vector<32x32xf32>
    %c0_16 = arith.constant 0 : index
    %c0_17 = arith.constant 0 : index
    %29 = vector.load %arg5[%c0_16, %c0_17] : memref<1x32xf32, #tpu.memory_space<vmem>>, vector<1x32xf32>
    %30 = vector.broadcast %29 : vector<1x32xf32> to vector<32x32xf32>
    %31 = arith.addf %28, %30 : vector<32x32xf32>
    %32 = arith.truncf %31 : vector<32x32xf32> to vector<32x32xbf16>
    %c0_18 = arith.constant 0 : index
    %c0_19 = arith.constant 0 : index
    %33 = vector.load %arg8[%c0_18, %c0_19] : memref<32x64xbf16, #tpu.memory_space<vmem>>, vector<32x64xbf16>
    %cst_20 = arith.constant dense<0.000000e+00> : vector<32x64xf32>
    %34 = tpu.matmul %32, %33, %cst_20 {dimension_numbers = #tpu.dot_dimension_numbers<[1], [0], [0], [1], [0, 0, 1, 1], [], []>} : vector<32x32xbf16>, vector<32x64xbf16>, vector<32x64xf32> -> vector<32x64xf32>
    %c0_21 = arith.constant 0 : index
    %c0_22 = arith.constant 0 : index
    %35 = vector.load %arg9[%c0_21, %c0_22] : memref<1x64xf32, #tpu.memory_space<vmem>>, vector<1x64xf32>
    %36 = vector.broadcast %35 : vector<1x64xf32> to vector<32x64xf32>
    %37 = arith.addf %34, %36 : vector<32x64xf32>
    %cst_23 = arith.constant 0.000000e+00 : f32
    %38 = vector.broadcast %cst_23 : f32 to vector<32x64xf32>
    %39 = arith.cmpf oge, %37, %38 : vector<32x64xf32>
    %cst_24 = arith.constant 2.000000e-01 : f32
    %40 = vector.broadcast %cst_24 : f32 to vector<32x64xf32>
    %41 = arith.mulf %40, %37 : vector<32x64xf32>
    %42 = arith.select %39, %37, %41 : vector<32x64xi1>, vector<32x64xf32>
    %43 = arith.mulf %42, %42 : vector<32x64xf32>
    %44 = tpu.concatenate %42, %43 in 0 : vector<32x64xf32>, vector<32x64xf32> -> vector<64x64xf32>
    %c0_25 = arith.constant 0 : index
    %c0_26 = arith.constant 0 : index
    %45 = vector.load %arg12[%c0_25, %c0_26] : memref<64x2xf32, #tpu.memory_space<vmem>>, vector<64x2xf32>
    %cst_27 = arith.constant dense<0.000000e+00> : vector<64x2xf32>
    %46 = tpu.matmul %44, %45, %cst_27 {dimension_numbers = #tpu.dot_dimension_numbers<[1], [0], [0], [1], [0, 0, 1, 1], [], []>} : vector<64x64xf32>, vector<64x2xf32>, vector<64x2xf32> -> vector<64x2xf32>
    %c0_28 = arith.constant 0 : index
    %c0_29 = arith.constant 0 : index
    %47 = vector.load %arg13[%c0_28, %c0_29] : memref<2x64xf32, #tpu.memory_space<vmem>>, vector<2x64xf32>
    %cst_30 = arith.constant dense<0.000000e+00> : vector<64x64xf32>
    %48 = tpu.matmul %46, %47, %cst_30 {dimension_numbers = #tpu.dot_dimension_numbers<[1], [0], [0], [1], [0, 0, 1, 1], [], []>} : vector<64x2xf32>, vector<2x64xf32>, vector<64x64xf32> -> vector<64x64xf32>
    %49 = vector.extract_strided_slice %48 {offsets = [0, 0], sizes = [32, 64], strides = [1, 1]} : vector<64x64xf32> to vector<32x64xf32>
    %50 = vector.extract_strided_slice %48 {offsets = [32, 0], sizes = [32, 64], strides = [1, 1]} : vector<64x64xf32> to vector<32x64xf32>
    %51 = arith.mulf %49, %49 : vector<32x64xf32>
    %52 = arith.subf %50, %51 : vector<32x64xf32>
    %53 = arith.subf %42, %49 : vector<32x64xf32>
    %cst_31 = arith.constant 9.99999974E-6 : f32
    %54 = vector.broadcast %cst_31 : f32 to vector<32x64xf32>
    %55 = arith.addf %52, %54 : vector<32x64xf32>
    %56 = math.rsqrt %55 : vector<32x64xf32>
    %57 = arith.mulf %53, %56 : vector<32x64xf32>
    %c0_32 = arith.constant 0 : index
    %c0_33 = arith.constant 0 : index
    %58 = vector.load %arg10[%c0_32, %c0_33] : memref<1x64xf32, #tpu.memory_space<vmem>>, vector<1x64xf32>
    %59 = vector.broadcast %58 : vector<1x64xf32> to vector<32x64xf32>
    %60 = arith.mulf %57, %59 : vector<32x64xf32>
    %c0_34 = arith.constant 0 : index
    %c0_35 = arith.constant 0 : index
    %61 = vector.load %arg11[%c0_34, %c0_35] : memref<1x64xf32, #tpu.memory_space<vmem>>, vector<1x64xf32>
    %62 = vector.broadcast %61 : vector<1x64xf32> to vector<32x64xf32>
    %63 = arith.addf %60, %62 : vector<32x64xf32>
    %64 = arith.truncf %63 : vector<32x64xf32> to vector<32x64xbf16>
    %c0_36 = arith.constant 0 : index
    %c0_37 = arith.constant 0 : index
    %65 = vector.load %arg14[%c0_36, %c0_37] : memref<64x128xbf16, #tpu.memory_space<vmem>>, vector<64x128xbf16>
    %cst_38 = arith.constant dense<0.000000e+00> : vector<32x128xf32>
    %66 = tpu.matmul %64, %65, %cst_38 {dimension_numbers = #tpu.dot_dimension_numbers<[1], [0], [0], [1], [0, 0, 1, 1], [], []>} : vector<32x64xbf16>, vector<64x128xbf16>, vector<32x128xf32> -> vector<32x128xf32>
    %c0_39 = arith.constant 0 : index
    %c0_40 = arith.constant 0 : index
    %67 = vector.load %arg15[%c0_39, %c0_40] : memref<1x128xf32, #tpu.memory_space<vmem>>, vector<1x128xf32>
    %68 = vector.broadcast %67 : vector<1x128xf32> to vector<32x128xf32>
    %69 = arith.addf %66, %68 : vector<32x128xf32>
    %cst_41 = arith.constant 0.000000e+00 : f32
    %70 = vector.broadcast %cst_41 : f32 to vector<32x128xf32>
    %71 = arith.cmpf oge, %69, %70 : vector<32x128xf32>
    %cst_42 = arith.constant 2.000000e-01 : f32
    %72 = vector.broadcast %cst_42 : f32 to vector<32x128xf32>
    %73 = arith.mulf %72, %69 : vector<32x128xf32>
    %74 = arith.select %71, %69, %73 : vector<32x128xi1>, vector<32x128xf32>
    %75 = arith.mulf %74, %74 : vector<32x128xf32>
    %76 = tpu.concatenate %74, %75 in 0 : vector<32x128xf32>, vector<32x128xf32> -> vector<64x128xf32>
    %c0_43 = arith.constant 0 : index
    %c0_44 = arith.constant 0 : index
    %77 = vector.load %arg18[%c0_43, %c0_44] : memref<128x4xf32, #tpu.memory_space<vmem>>, vector<128x4xf32>
    %cst_45 = arith.constant dense<0.000000e+00> : vector<64x4xf32>
    %78 = tpu.matmul %76, %77, %cst_45 {dimension_numbers = #tpu.dot_dimension_numbers<[1], [0], [0], [1], [0, 0, 1, 1], [], []>} : vector<64x128xf32>, vector<128x4xf32>, vector<64x4xf32> -> vector<64x4xf32>
    %c0_46 = arith.constant 0 : index
    %c0_47 = arith.constant 0 : index
    %79 = vector.load %arg19[%c0_46, %c0_47] : memref<4x128xf32, #tpu.memory_space<vmem>>, vector<4x128xf32>
    %cst_48 = arith.constant dense<0.000000e+00> : vector<64x128xf32>
    %80 = tpu.matmul %78, %79, %cst_48 {dimension_numbers = #tpu.dot_dimension_numbers<[1], [0], [0], [1], [0, 0, 1, 1], [], []>} : vector<64x4xf32>, vector<4x128xf32>, vector<64x128xf32> -> vector<64x128xf32>
    %81 = vector.extract_strided_slice %80 {offsets = [0, 0], sizes = [32, 128], strides = [1, 1]} : vector<64x128xf32> to vector<32x128xf32>
    %82 = vector.extract_strided_slice %80 {offsets = [32, 0], sizes = [32, 128], strides = [1, 1]} : vector<64x128xf32> to vector<32x128xf32>
    %83 = arith.mulf %81, %81 : vector<32x128xf32>
    %84 = arith.subf %82, %83 : vector<32x128xf32>
    %85 = arith.subf %74, %81 : vector<32x128xf32>
    %cst_49 = arith.constant 9.99999974E-6 : f32
    %86 = vector.broadcast %cst_49 : f32 to vector<32x128xf32>
    %87 = arith.addf %84, %86 : vector<32x128xf32>
    %88 = math.rsqrt %87 : vector<32x128xf32>
    %89 = arith.mulf %85, %88 : vector<32x128xf32>
    %c0_50 = arith.constant 0 : index
    %c0_51 = arith.constant 0 : index
    %90 = vector.load %arg16[%c0_50, %c0_51] : memref<1x128xf32, #tpu.memory_space<vmem>>, vector<1x128xf32>
    %91 = vector.broadcast %90 : vector<1x128xf32> to vector<32x128xf32>
    %92 = arith.mulf %89, %91 : vector<32x128xf32>
    %c0_52 = arith.constant 0 : index
    %c0_53 = arith.constant 0 : index
    %93 = vector.load %arg17[%c0_52, %c0_53] : memref<1x128xf32, #tpu.memory_space<vmem>>, vector<1x128xf32>
    %94 = vector.broadcast %93 : vector<1x128xf32> to vector<32x128xf32>
    %95 = arith.addf %92, %94 : vector<32x128xf32>
    %96 = arith.truncf %95 : vector<32x128xf32> to vector<32x128xbf16>
    %c0_54 = arith.constant 0 : index
    %c0_55 = arith.constant 0 : index
    %97 = vector.load %arg26[%c0_54, %c0_55] : memref<32x128xbf16, #tpu.memory_space<vmem>>, vector<32x128xbf16>
    tpu.vector_store %arg26[%c0_54, %c0_55], %96 {strides = array<i32>} : memref<32x128xbf16, #tpu.memory_space<vmem>>, vector<32x128xbf16>,
    %c0_56 = arith.constant 0 : index
    %c0_57 = arith.constant 0 : index
    %98 = vector.load %arg20[%c0_56, %c0_57] : memref<128x128xbf16, #tpu.memory_space<vmem>>, vector<128x128xbf16>
    %cst_58 = arith.constant dense<0.000000e+00> : vector<32x128xf32>
    %99 = tpu.matmul %96, %98, %cst_58 {dimension_numbers = #tpu.dot_dimension_numbers<[1], [0], [0], [1], [0, 0, 1, 1], [], []>} : vector<32x128xbf16>, vector<128x128xbf16>, vector<32x128xf32> -> vector<32x128xf32>
    %c0_59 = arith.constant 0 : index
    %c0_60 = arith.constant 0 : index
    %100 = vector.load %arg21[%c0_59, %c0_60] : memref<1x128xf32, #tpu.memory_space<vmem>>, vector<1x128xf32>
    %101 = vector.broadcast %100 : vector<1x128xf32> to vector<32x128xf32>
    %102 = arith.addf %99, %101 : vector<32x128xf32>
    %cst_61 = arith.constant 0.000000e+00 : f32
    %103 = vector.broadcast %cst_61 : f32 to vector<32x128xf32>
    %104 = arith.cmpf oge, %102, %103 : vector<32x128xf32>
    %cst_62 = arith.constant 2.000000e-01 : f32
    %105 = vector.broadcast %cst_62 : f32 to vector<32x128xf32>
    %106 = arith.mulf %105, %102 : vector<32x128xf32>
    %107 = arith.select %104, %102, %106 : vector<32x128xi1>, vector<32x128xf32>
    %108 = arith.mulf %107, %107 : vector<32x128xf32>
    %109 = tpu.concatenate %107, %108 in 0 : vector<32x128xf32>, vector<32x128xf32> -> vector<64x128xf32>
    %c0_63 = arith.constant 0 : index
    %c0_64 = arith.constant 0 : index
    %110 = vector.load %arg24[%c0_63, %c0_64] : memref<128x4xf32, #tpu.memory_space<vmem>>, vector<128x4xf32>
    %cst_65 = arith.constant dense<0.000000e+00> : vector<64x4xf32>
    %111 = tpu.matmul %109, %110, %cst_65 {dimension_numbers = #tpu.dot_dimension_numbers<[1], [0], [0], [1], [0, 0, 1, 1], [], []>} : vector<64x128xf32>, vector<128x4xf32>, vector<64x4xf32> -> vector<64x4xf32>
    %c0_66 = arith.constant 0 : index
    %c0_67 = arith.constant 0 : index
    %112 = vector.load %arg25[%c0_66, %c0_67] : memref<4x128xf32, #tpu.memory_space<vmem>>, vector<4x128xf32>
    %cst_68 = arith.constant dense<0.000000e+00> : vector<64x128xf32>
    %113 = tpu.matmul %111, %112, %cst_68 {dimension_numbers = #tpu.dot_dimension_numbers<[1], [0], [0], [1], [0, 0, 1, 1], [], []>} : vector<64x4xf32>, vector<4x128xf32>, vector<64x128xf32> -> vector<64x128xf32>
    %114 = vector.extract_strided_slice %113 {offsets = [0, 0], sizes = [32, 128], strides = [1, 1]} : vector<64x128xf32> to vector<32x128xf32>
    %115 = vector.extract_strided_slice %113 {offsets = [32, 0], sizes = [32, 128], strides = [1, 1]} : vector<64x128xf32> to vector<32x128xf32>
    %116 = arith.mulf %114, %114 : vector<32x128xf32>
    %117 = arith.subf %115, %116 : vector<32x128xf32>
    %118 = arith.subf %107, %114 : vector<32x128xf32>
    %cst_69 = arith.constant 9.99999974E-6 : f32
    %119 = vector.broadcast %cst_69 : f32 to vector<32x128xf32>
    %120 = arith.addf %117, %119 : vector<32x128xf32>
    %121 = math.rsqrt %120 : vector<32x128xf32>
    %122 = arith.mulf %118, %121 : vector<32x128xf32>
    %c0_70 = arith.constant 0 : index
    %c0_71 = arith.constant 0 : index
    %123 = vector.load %arg22[%c0_70, %c0_71] : memref<1x128xf32, #tpu.memory_space<vmem>>, vector<1x128xf32>
    %124 = vector.broadcast %123 : vector<1x128xf32> to vector<32x128xf32>
    %125 = arith.mulf %122, %124 : vector<32x128xf32>
    %c0_72 = arith.constant 0 : index
    %c0_73 = arith.constant 0 : index
    %126 = vector.load %arg23[%c0_72, %c0_73] : memref<1x128xf32, #tpu.memory_space<vmem>>, vector<1x128xf32>
    %127 = vector.broadcast %126 : vector<1x128xf32> to vector<32x128xf32>
    %128 = arith.addf %125, %127 : vector<32x128xf32>
    %129 = arith.truncf %128 : vector<32x128xf32> to vector<32x128xbf16>
    %130 = arith.extf %129 : vector<32x128xbf16> to vector<32x128xf32>
    %131 = tpu.iota {dimensions = array<i32: 0>} : vector<32x1xi32>
    %c32_i32 = arith.constant 32 : i32
    %132 = arith.muli %arg0, %c32_i32 : i32
    %133 = vector.broadcast %132 : i32 to vector<32x1xi32>
    %134 = arith.addi %131, %133 : vector<32x1xi32>
    %c100_i32 = arith.constant 100 : i32
    %135 = vector.broadcast %c100_i32 : i32 to vector<32x1xi32>
    %136 = arith.cmpi slt, %134, %135 : vector<32x1xi32>
    %cst_74 = arith.constant -3.40282347E+38 : f32
    %137 = vector.shape_cast %136 : vector<32x1xi1> to vector<32x1xi1>
    %138 = vector.broadcast %137 : vector<32x1xi1> to vector<32x128xi1>
    %139 = vector.broadcast %cst_74 : f32 to vector<32x128xf32>
    %140 = arith.select %138, %130, %139 : vector<32x128xi1>, vector<32x128xf32>
    %cst_75 = arith.constant dense<0xFF800000> : vector<128xf32>
    %141 = vector.multi_reduction <maximumf>, %140, %cst_75 [0] : vector<32x128xf32> to vector<128xf32>
    %142 = vector.shape_cast %141 : vector<128xf32> to vector<1x128xf32>
    %143 = vector.shape_cast %142 : vector<1x128xf32> to vector<1x128xf32>
    %144 = vector.broadcast %143 : vector<1x128xf32> to vector<8x128xf32>
    %c0_76 = arith.constant 0 : index
    %c0_77 = arith.constant 0 : index
    %145 = vector.load %arg27[%c0_76, %c0_77] : memref<8x128xf32, #tpu.memory_space<vmem>>, vector<8x128xf32>
    tpu.vector_store %arg27[%c0_76, %c0_77], %144 {strides = array<i32>} : memref<8x128xf32, #tpu.memory_space<vmem>>, vector<8x128xf32>,
    return
  }
  func.func @transform_0(%arg0: i32) -> (i32, i32) {
    %c0_i32 = arith.constant 0 : i32
    %c0_i32_0 = arith.constant 0 : i32
    return %arg0, %c0_i32 : i32, i32
  }
  func.func @transform_1(%arg0: i32) -> (i32, i32) {
    %c0_i32 = arith.constant 0 : i32
    %c0_i32_0 = arith.constant 0 : i32
    %c0_i32_1 = arith.constant 0 : i32
    return %c0_i32, %c0_i32_0 : i32, i32
  }
  func.func @transform_2(%arg0: i32) -> (i32, i32) {
    %c0_i32 = arith.constant 0 : i32
    %c0_i32_0 = arith.constant 0 : i32
    %c0_i32_1 = arith.constant 0 : i32
    return %c0_i32, %c0_i32_0 : i32, i32
  }
  func.func @transform_3(%arg0: i32) -> (i32, i32) {
    %c0_i32 = arith.constant 0 : i32
    %c0_i32_0 = arith.constant 0 : i32
    %c0_i32_1 = arith.constant 0 : i32
    return %c0_i32, %c0_i32_0 : i32, i32
  }
  func.func @transform_4(%arg0: i32) -> (i32, i32) {
    %c0_i32 = arith.constant 0 : i32
    %c0_i32_0 = arith.constant 0 : i32
    %c0_i32_1 = arith.constant 0 : i32
    return %c0_i32, %c0_i32_0 : i32, i32
  }
  func.func @transform_5(%arg0: i32) -> (i32, i32) {
    %c0_i32 = arith.constant 0 : i32
    %c0_i32_0 = arith.constant 0 : i32
    %c0_i32_1 = arith.constant 0 : i32
    return %c0_i32, %c0_i32_0 : i32, i32
  }
  func.func @transform_6(%arg0: i32) -> (i32, i32) {
    %c0_i32 = arith.constant 0 : i32
    %c0_i32_0 = arith.constant 0 : i32
    %c0_i32_1 = arith.constant 0 : i32
    return %c0_i32, %c0_i32_0 : i32, i32
  }
  func.func @transform_7(%arg0: i32) -> (i32, i32) {
    %c0_i32 = arith.constant 0 : i32
    %c0_i32_0 = arith.constant 0 : i32
    %c0_i32_1 = arith.constant 0 : i32
    return %c0_i32, %c0_i32_0 : i32, i32
  }
  func.func @transform_8(%arg0: i32) -> (i32, i32) {
    %c0_i32 = arith.constant 0 : i32
    %c0_i32_0 = arith.constant 0 : i32
    %c0_i32_1 = arith.constant 0 : i32
    return %c0_i32, %c0_i32_0 : i32, i32
  }
  func.func @transform_9(%arg0: i32) -> (i32, i32) {
    %c0_i32 = arith.constant 0 : i32
    %c0_i32_0 = arith.constant 0 : i32
    %c0_i32_1 = arith.constant 0 : i32
    return %c0_i32, %c0_i32_0 : i32, i32
  }
  func.func @transform_10(%arg0: i32) -> (i32, i32) {
    %c0_i32 = arith.constant 0 : i32
    %c0_i32_0 = arith.constant 0 : i32
    %c0_i32_1 = arith.constant 0 : i32
    return %c0_i32, %c0_i32_0 : i32, i32
  }
  func.func @transform_11(%arg0: i32) -> (i32, i32) {
    %c0_i32 = arith.constant 0 : i32
    %c0_i32_0 = arith.constant 0 : i32
    %c0_i32_1 = arith.constant 0 : i32
    return %c0_i32, %c0_i32_0 : i32, i32
  }
  func.func @transform_12(%arg0: i32) -> (i32, i32) {
    %c0_i32 = arith.constant 0 : i32
    %c0_i32_0 = arith.constant 0 : i32
    %c0_i32_1 = arith.constant 0 : i32
    return %c0_i32, %c0_i32_0 : i32, i32
  }
  func.func @transform_13(%arg0: i32) -> (i32, i32) {
    %c0_i32 = arith.constant 0 : i32
    %c0_i32_0 = arith.constant 0 : i32
    %c0_i32_1 = arith.constant 0 : i32
    return %c0_i32, %c0_i32_0 : i32, i32
  }
  func.func @transform_14(%arg0: i32) -> (i32, i32) {
    %c0_i32 = arith.constant 0 : i32
    %c0_i32_0 = arith.constant 0 : i32
    %c0_i32_1 = arith.constant 0 : i32
    return %c0_i32, %c0_i32_0 : i32, i32
  }
  func.func @transform_15(%arg0: i32) -> (i32, i32) {
    %c0_i32 = arith.constant 0 : i32
    %c0_i32_0 = arith.constant 0 : i32
    %c0_i32_1 = arith.constant 0 : i32
    return %c0_i32, %c0_i32_0 : i32, i32
  }
  func.func @transform_16(%arg0: i32) -> (i32, i32) {
    %c0_i32 = arith.constant 0 : i32
    %c0_i32_0 = arith.constant 0 : i32
    %c0_i32_1 = arith.constant 0 : i32
    return %c0_i32, %c0_i32_0 : i32, i32
  }
  func.func @transform_17(%arg0: i32) -> (i32, i32) {
    %c0_i32 = arith.constant 0 : i32
    %c0_i32_0 = arith.constant 0 : i32
    %c0_i32_1 = arith.constant 0 : i32
    return %c0_i32, %c0_i32_0 : i32, i32
  }
  func.func @transform_18(%arg0: i32) -> (i32, i32) {
    %c0_i32 = arith.constant 0 : i32
    %c0_i32_0 = arith.constant 0 : i32
    %c0_i32_1 = arith.constant 0 : i32
    return %c0_i32, %c0_i32_0 : i32, i32
  }
  func.func @transform_19(%arg0: i32) -> (i32, i32) {
    %c0_i32 = arith.constant 0 : i32
    %c0_i32_0 = arith.constant 0 : i32
    %c0_i32_1 = arith.constant 0 : i32
    return %c0_i32, %c0_i32_0 : i32, i32
  }
  func.func @transform_20(%arg0: i32) -> (i32, i32) {
    %c0_i32 = arith.constant 0 : i32
    %c0_i32_0 = arith.constant 0 : i32
    %c0_i32_1 = arith.constant 0 : i32
    return %c0_i32, %c0_i32_0 : i32, i32
  }
  func.func @transform_21(%arg0: i32) -> (i32, i32) {
    %c0_i32 = arith.constant 0 : i32
    %c0_i32_0 = arith.constant 0 : i32
    %c0_i32_1 = arith.constant 0 : i32
    return %c0_i32, %c0_i32_0 : i32, i32
  }
  func.func @transform_22(%arg0: i32) -> (i32, i32) {
    %c0_i32 = arith.constant 0 : i32
    %c0_i32_0 = arith.constant 0 : i32
    %c0_i32_1 = arith.constant 0 : i32
    return %c0_i32, %c0_i32_0 : i32, i32
  }
  func.func @transform_23(%arg0: i32) -> (i32, i32) {
    %c0_i32 = arith.constant 0 : i32
    %c0_i32_0 = arith.constant 0 : i32
    %c0_i32_1 = arith.constant 0 : i32
    return %c0_i32, %c0_i32_0 : i32, i32
  }
  func.func @transform_24(%arg0: i32) -> (i32, i32) {
    %c0_i32 = arith.constant 0 : i32
    %c0_i32_0 = arith.constant 0 : i32
    %c0_i32_1 = arith.constant 0 : i32
    return %c0_i32, %c0_i32_0 : i32, i32
  }
  func.func @transform_25(%arg0: i32) -> (i32, i32) {
    %c0_i32 = arith.constant 0 : i32
    %c0_i32_0 = arith.constant 0 : i32
    return %arg0, %c0_i32 : i32, i32
  }
  func.func @transform_26(%arg0: i32) -> (i32, i32) {
    %c0_i32 = arith.constant 0 : i32
    %c0_i32_0 = arith.constant 0 : i32
    return %arg0, %c0_i32 : i32, i32
  }
}

</mosaic_0001>

<llo_original>
// kernel: tpu_custom_call.1
$region0: #{tpu_custom_call.1}
  #allocation0 [shape = 'u32[]', space=smem, size = 0x4, offset = 0x4, fixed_abs, tag = 'smem constant byte address 0x4 - core index']
  #allocation1 [shape = 'u32[144,128]{1,0:T(1,128)}', space=vmem, size = 0x12000, scoped, tag = 'internal scratch']
  %s0 = inlined_call_operand.vmem [shape: bf16[128,4], index: 0, kind: input, shape index: {}]
  %s1 = inlined_call_operand.vmem [shape: bf16[4,32], index: 1, kind: input, shape index: {}]
  %s2 = inlined_call_operand.vmem [shape: f32[1,32], index: 2, kind: input, shape index: {}]
  %s3 = inlined_call_operand.vmem [shape: f32[1,32], index: 3, kind: input, shape index: {}]
  %s4 = inlined_call_operand.vmem [shape: f32[1,32], index: 4, kind: input, shape index: {}]
  %s5 = inlined_call_operand.vmem [shape: f32[32,1], index: 5, kind: input, shape index: {}]
  %s6 = inlined_call_operand.vmem [shape: f32[1,32], index: 6, kind: input, shape index: {}]
  %s7 = inlined_call_operand.vmem [shape: bf16[32,64], index: 7, kind: input, shape index: {}]
  %s8 = inlined_call_operand.vmem [shape: f32[1,64], index: 8, kind: input, shape index: {}]
  %s9 = inlined_call_operand.vmem [shape: f32[1,64], index: 9, kind: input, shape index: {}]
  %s10 = inlined_call_operand.vmem [shape: f32[1,64], index: 10, kind: input, shape index: {}]
  %s11 = inlined_call_operand.vmem [shape: f32[64,2], index: 11, kind: input, shape index: {}]
  %s12 = inlined_call_operand.vmem [shape: f32[2,64], index: 12, kind: input, shape index: {}]
  %s13 = inlined_call_operand.vmem [shape: bf16[64,128], index: 13, kind: input, shape index: {}]
  %s14 = inlined_call_operand.vmem [shape: f32[1,128], index: 14, kind: input, shape index: {}]
  %s15 = inlined_call_operand.vmem [shape: f32[1,128], index: 15, kind: input, shape index: {}]
  %s16 = inlined_call_operand.vmem [shape: f32[1,128], index: 16, kind: input, shape index: {}]
  %s17 = inlined_call_operand.vmem [shape: f32[128,4], index: 17, kind: input, shape index: {}]
  %s18 = inlined_call_operand.vmem [shape: f32[4,128], index: 18, kind: input, shape index: {}]
  %s19 = inlined_call_operand.vmem [shape: bf16[128,128], index: 19, kind: input, shape index: {}]
  %s20 = inlined_call_operand.vmem [shape: f32[1,128], index: 20, kind: input, shape index: {}]
  %s21 = inlined_call_operand.vmem [shape: f32[1,128], index: 21, kind: input, shape index: {}]
  %s22 = inlined_call_operand.vmem [shape: f32[1,128], index: 22, kind: input, shape index: {}]
  %s23 = inlined_call_operand.vmem [shape: f32[128,4], index: 23, kind: input, shape index: {}]
  %s24 = inlined_call_operand.vmem [shape: f32[4,128], index: 24, kind: input, shape index: {}]
  %s25 = inlined_call_operand.hbm [shape: bf16[128,128], index: 25, kind: output, shape index: {0}]
  %s26 = inlined_call_operand.hbm [shape: f32[32,128], index: 26, kind: output, shape index: {1}]
  %27 = xla_tuple %s25, %s26
  %s28 = sld [smem:[#allocation0]]
  $region141: #{tpu_custom_call.1} parent=0
    _
  %s30 = ssub.s32 1, %s28
  %s31 = scalar_select 0, %s30, %s28
  $region1: #{tpu_custom_call.1} parent=0
    #allocation2 [shape = 'u8[16384]{0}', space=vmem, size = 0x4000, scoped, tag = 'output window, operand 0']
    #allocation3 [shape = 's32[2]{0}', space=sflag, size = 0x8, scoped, tag = 'scoped memory for tpu_custom_call.1']
    #allocation4 [shape = 'u8[8192]{0}', space=vmem, size = 0x2000, scoped, tag = 'output window, operand 1']
    #allocation5 [shape = 's32[2]{0}', space=sflag, size = 0x8, scoped, tag = 'scoped memory for tpu_custom_call.1']
    %32 = vsyncpa [#allocation3], 0
    %s33 = scalar_lea.sflag [#allocation3], 1
    %34 = vsyncpa %s33, 0
    %35 = vsyncpa [#allocation5], 0
    %s36 = scalar_lea.sflag [#allocation5], 1
    %37 = vsyncpa %s36, 0
    loop: start=0, step=1, limit=6
    $region2: #{tpu_custom_call.1} parent=1 // loop_pre_header
      _
    $region3: #{tpu_custom_call.1} parent=1 // loop_header
      %s39 = sphi 0, %s43
      %p40 = scmp.ge.s32.totalorder %s39, 6
      %s49 = sphi 0, %s51
      %s52 = sphi 0, %s49
      %s53 = sphi 0, %s52
      %s69 = sphi 0, %s53
      %s73 = sphi 0, %s73
      %s75 = sphi 0, %s73
      %s76 = sphi 0, %s75
      %s90 = sphi 0, %s76
      %s94 = sphi 0, %s94
      %s96 = sphi 0, %s94
      %s97 = sphi 0, %s96
      %s111 = sphi 0, %s97
      %s115 = sphi 0, %s115
      %s117 = sphi 0, %s115
      %s118 = sphi 0, %s117
      %s132 = sphi 0, %s118
      %s136 = sphi 0, %s136
      %s138 = sphi 0, %s136
      %s139 = sphi 0, %s138
      %s153 = sphi 0, %s139
      %s157 = sphi 0, %s157
      %s159 = sphi 0, %s157
      %s160 = sphi 0, %s159
      %s174 = sphi 0, %s160
      %s178 = sphi 0, %s178
      %s180 = sphi 0, %s178
      %s181 = sphi 0, %s180
      %s195 = sphi 0, %s181
      %s199 = sphi 0, %s199
      %s201 = sphi 0, %s199
      %s202 = sphi 0, %s201
      %s216 = sphi 0, %s202
      %s220 = sphi 0, %s220
      %s222 = sphi 0, %s220
      %s223 = sphi 0, %s222
      %s237 = sphi 0, %s223
      %s241 = sphi 0, %s241
      %s243 = sphi 0, %s241
      %s244 = sphi 0, %s243
      %s258 = sphi 0, %s244
      %s262 = sphi 0, %s262
      %s264 = sphi 0, %s262
      %s265 = sphi 0, %s264
      %s279 = sphi 0, %s265
      %s283 = sphi 0, %s283
      %s285 = sphi 0, %s283
      %s286 = sphi 0, %s285
      %s300 = sphi 0, %s286
      %s304 = sphi 0, %s304
      %s306 = sphi 0, %s304
      %s307 = sphi 0, %s306
      %s321 = sphi 0, %s307
      %s325 = sphi 0, %s325
      %s327 = sphi 0, %s325
      %s328 = sphi 0, %s327
      %s342 = sphi 0, %s328
      %s346 = sphi 0, %s346
      %s348 = sphi 0, %s346
      %s349 = sphi 0, %s348
      %s363 = sphi 0, %s349
      %s367 = sphi 0, %s367
      %s369 = sphi 0, %s367
      %s370 = sphi 0, %s369
      %s384 = sphi 0, %s370
      %s388 = sphi 0, %s388
      %s390 = sphi 0, %s388
      %s391 = sphi 0, %s390
      %s405 = sphi 0, %s391
      %s409 = sphi 0, %s409
      %s411 = sphi 0, %s409
      %s412 = sphi 0, %s411
      %s426 = sphi 0, %s412
      %s430 = sphi 0, %s430
      %s432 = sphi 0, %s430
      %s433 = sphi 0, %s432
      %s447 = sphi 0, %s433
      %s451 = sphi 0, %s451
      %s453 = sphi 0, %s451
      %s454 = sphi 0, %s453
      %s468 = sphi 0, %s454
      %s472 = sphi 0, %s472
      %s474 = sphi 0, %s472
      %s475 = sphi 0, %s474
      %s489 = sphi 0, %s475
      %s493 = sphi 0, %s493
      %s495 = sphi 0, %s493
      %s496 = sphi 0, %s495
      %s510 = sphi 0, %s496
      %s514 = sphi 0, %s514
      %s516 = sphi 0, %s514
      %s517 = sphi 0, %s516
      %s531 = sphi 0, %s517
      %s535 = sphi 0, %s535
      %s537 = sphi 0, %s535
      %s538 = sphi 0, %s537
      %s552 = sphi 0, %s538
      %s556 = sphi 0, %s556
      %s558 = sphi 0, %s556
      %s559 = sphi 0, %s558
      %s573 = sphi 0, %s559
      %s579 = sphi 0, %s581
      %s582 = sphi 0, %s579
      %s583 = sphi 0, %s582
      %s599 = sphi 0, %s583
      %s605 = sphi 0, %s607
      %s608 = sphi 0, %s605
      %s609 = sphi 0, %s608
      %s625 = sphi 0, %s609
    $region4: #{tpu_custom_call.1} parent=1 // loop_header_branch
      %42 = sbr.rel (%p40) target = $region8
    $region5: #{tpu_custom_call.1} parent=1 // loop_body
      %s44 = ssub.s32 %s39, 1
      %s45 = ssub.s32 %s39, 2
      %s46 = sadd.s32 %s39, 1
      %s47 = ssub.s32 %s39, %s46
      %p48 = scmp.eq.s32.totalorder %s47, 0
      %s50 = sadd.s32 %s49, 1
      %s51 = scalar_select %p48, %s49, %s50
      %p54 = pneg %p48
      %p55 = scmp.eq.s32.totalorder %s39, 3
      %p56 = por %p54, %p55
      %p57 = scmp.ne.s32.totalorder %s49, %s52
      %p58 = scmp.eq.s32.totalorder %s39, 0
      %p59 = por %p57, %p58
      %p60 = scmp.ne.s32.totalorder %s49, %s52
      %p61 = scmp.eq.s32.totalorder %s44, 3
      %p62 = por %p60, %p61
      %p63 = scmp.ne.s32.totalorder %s52, %s53
      %p64 = scmp.eq.s32.totalorder %s44, 0
      %p65 = por %p63, %p64
      %p66 = scmp.ne.s32.totalorder %s52, %s53
      %p67 = scmp.eq.s32.totalorder %s45, 3
      %p68 = por %p66, %p67
      %p70 = scmp.ne.s32.totalorder %s53, %s69
      %p71 = scmp.eq.s32.totalorder %s45, 0
      %p72 = por %p70, %p71
      %s74 = sadd.s32 %s73, 1
      %p77 = scmp.eq.s32.totalorder %s39, 3
      %p78 = scmp.ne.s32.totalorder %s73, %s75
      %p79 = scmp.eq.s32.totalorder %s39, 0
      %p80 = por %p78, %p79
      %p81 = scmp.ne.s32.totalorder %s73, %s75
      %p82 = scmp.eq.s32.totalorder %s44, 3
      %p83 = por %p81, %p82
      %p84 = scmp.ne.s32.totalorder %s75, %s76
      %p85 = scmp.eq.s32.totalorder %s44, 0
      %p86 = por %p84, %p85
      %p87 = scmp.ne.s32.totalorder %s75, %s76
      %p88 = scmp.eq.s32.totalorder %s45, 3
      %p89 = por %p87, %p88
      %p91 = scmp.ne.s32.totalorder %s76, %s90
      %p92 = scmp.eq.s32.totalorder %s45, 0
      %p93 = por %p91, %p92
      %s95 = sadd.s32 %s94, 1
      %p98 = scmp.eq.s32.totalorder %s39, 3
      %p99 = scmp.ne.s32.totalorder %s94, %s96
      %p100 = scmp.eq.s32.totalorder %s39, 0
      %p101 = por %p99, %p100
      %p102 = scmp.ne.s32.totalorder %s94, %s96
      %p103 = scmp.eq.s32.totalorder %s44, 3
      %p104 = por %p102, %p103
      %p105 = scmp.ne.s32.totalorder %s96, %s97
      %p106 = scmp.eq.s32.totalorder %s44, 0
      %p107 = por %p105, %p106
      %p108 = scmp.ne.s32.totalorder %s96, %s97
      %p109 = scmp.eq.s32.totalorder %s45, 3
      %p110 = por %p108, %p109
      %p112 = scmp.ne.s32.totalorder %s97, %s111
      %p113 = scmp.eq.s32.totalorder %s45, 0
      %p114 = por %p112, %p113
      %s116 = sadd.s32 %s115, 1
      %p119 = scmp.eq.s32.totalorder %s39, 3
      %p120 = scmp.ne.s32.totalorder %s115, %s117
      %p121 = scmp.eq.s32.totalorder %s39, 0
      %p122 = por %p120, %p121
      %p123 = scmp.ne.s32.totalorder %s115, %s117
      %p124 = scmp.eq.s32.totalorder %s44, 3
      %p125 = por %p123, %p124
      %p126 = scmp.ne.s32.totalorder %s117, %s118
      %p127 = scmp.eq.s32.totalorder %s44, 0
      %p128 = por %p126, %p127
      %p129 = scmp.ne.s32.totalorder %s117, %s118
      %p130 = scmp.eq.s32.totalorder %s45, 3
      %p131 = por %p129, %p130
      %p133 = scmp.ne.s32.totalorder %s118, %s132
      %p134 = scmp.eq.s32.totalorder %s45, 0
      %p135 = por %p133, %p134
      %s137 = sadd.s32 %s136, 1
      %p140 = scmp.eq.s32.totalorder %s39, 3
      %p141 = scmp.ne.s32.totalorder %s136, %s138
      %p142 = scmp.eq.s32.totalorder %s39, 0
      %p143 = por %p141, %p142
      %p144 = scmp.ne.s32.totalorder %s136, %s138
      %p145 = scmp.eq.s32.totalorder %s44, 3
      %p146 = por %p144, %p145
      %p147 = scmp.ne.s32.totalorder %s138, %s139
      %p148 = scmp.eq.s32.totalorder %s44, 0
      %p149 = por %p147, %p148
      %p150 = scmp.ne.s32.totalorder %s138, %s139
      %p151 = scmp.eq.s32.totalorder %s45, 3
      %p152 = por %p150, %p151
      %p154 = scmp.ne.s32.totalorder %s139, %s153
      %p155 = scmp.eq.s32.totalorder %s45, 0
      %p156 = por %p154, %p155
      %s158 = sadd.s32 %s157, 1
      %p161 = scmp.eq.s32.totalorder %s39, 3
      %p162 = scmp.ne.s32.totalorder %s157, %s159
      %p163 = scmp.eq.s32.totalorder %s39, 0
      %p164 = por %p162, %p163
      %p165 = scmp.ne.s32.totalorder %s157, %s159
      %p166 = scmp.eq.s32.totalorder %s44, 3
      %p167 = por %p165, %p166
      %p168 = scmp.ne.s32.totalorder %s159, %s160
      %p169 = scmp.eq.s32.totalorder %s44, 0
      %p170 = por %p168, %p169
      %p171 = scmp.ne.s32.totalorder %s159, %s160
      %p172 = scmp.eq.s32.totalorder %s45, 3
      %p173 = por %p171, %p172
      %p175 = scmp.ne.s32.totalorder %s160, %s174
      %p176 = scmp.eq.s32.totalorder %s45, 0
      %p177 = por %p175, %p176
      %s179 = sadd.s32 %s178, 1
      %p182 = scmp.eq.s32.totalorder %s39, 3
      %p183 = scmp.ne.s32.totalorder %s178, %s180
      %p184 = scmp.eq.s32.totalorder %s39, 0
      %p185 = por %p183, %p184
      %p186 = scmp.ne.s32.totalorder %s178, %s180
      %p187 = scmp.eq.s32.totalorder %s44, 3
      %p188 = por %p186, %p187
      %p189 = scmp.ne.s32.totalorder %s180, %s181
      %p190 = scmp.eq.s32.totalorder %s44, 0
      %p191 = por %p189, %p190
      %p192 = scmp.ne.s32.totalorder %s180, %s181
      %p193 = scmp.eq.s32.totalorder %s45, 3
      %p194 = por %p192, %p193
      %p196 = scmp.ne.s32.totalorder %s181, %s195
      %p197 = scmp.eq.s32.totalorder %s45, 0
      %p198 = por %p196, %p197
      %s200 = sadd.s32 %s199, 1
      %p203 = scmp.eq.s32.totalorder %s39, 3
      %p204 = scmp.ne.s32.totalorder %s199, %s201
      %p205 = scmp.eq.s32.totalorder %s39, 0
      %p206 = por %p204, %p205
      %p207 = scmp.ne.s32.totalorder %s199, %s201
      %p208 = scmp.eq.s32.totalorder %s44, 3
      %p209 = por %p207, %p208
      %p210 = scmp.ne.s32.totalorder %s201, %s202
      %p211 = scmp.eq.s32.totalorder %s44, 0
      %p212 = por %p210, %p211
      %p213 = scmp.ne.s32.totalorder %s201, %s202
      %p214 = scmp.eq.s32.totalorder %s45, 3
      %p215 = por %p213, %p214
      %p217 = scmp.ne.s32.totalorder %s202, %s216
      %p218 = scmp.eq.s32.totalorder %s45, 0
      %p219 = por %p217, %p218
      %s221 = sadd.s32 %s220, 1
      %p224 = scmp.eq.s32.totalorder %s39, 3
      %p225 = scmp.ne.s32.totalorder %s220, %s222
      %p226 = scmp.eq.s32.totalorder %s39, 0
      %p227 = por %p225, %p226
      %p228 = scmp.ne.s32.totalorder %s220, %s222
      %p229 = scmp.eq.s32.totalorder %s44, 3
      %p230 = por %p228, %p229
      %p231 = scmp.ne.s32.totalorder %s222, %s223
      %p232 = scmp.eq.s32.totalorder %s44, 0
      %p233 = por %p231, %p232
      %p234 = scmp.ne.s32.totalorder %s222, %s223
      %p235 = scmp.eq.s32.totalorder %s45, 3
      %p236 = por %p234, %p235
      %p238 = scmp.ne.s32.totalorder %s223, %s237
      %p239 = scmp.eq.s32.totalorder %s45, 0
      %p240 = por %p238, %p239
      %s242 = sadd.s32 %s241, 1
      %p245 = scmp.eq.s32.totalorder %s39, 3
      %p246 = scmp.ne.s32.totalorder %s241, %s243
      %p247 = scmp.eq.s32.totalorder %s39, 0
      %p248 = por %p246, %p247
      %p249 = scmp.ne.s32.totalorder %s241, %s243
      %p250 = scmp.eq.s32.totalorder %s44, 3
      %p251 = por %p249, %p250
      %p252 = scmp.ne.s32.totalorder %s243, %s244
      %p253 = scmp.eq.s32.totalorder %s44, 0
      %p254 = por %p252, %p253
      %p255 = scmp.ne.s32.totalorder %s243, %s244
      %p256 = scmp.eq.s32.totalorder %s45, 3
      %p257 = por %p255, %p256
      %p259 = scmp.ne.s32.totalorder %s244, %s258
      %p260 = scmp.eq.s32.totalorder %s45, 0
      %p261 = por %p259, %p260
      %s263 = sadd.s32 %s262, 1
      %p266 = scmp.eq.s32.totalorder %s39, 3
      %p267 = scmp.ne.s32.totalorder %s262, %s264
      %p268 = scmp.eq.s32.totalorder %s39, 0
      %p269 = por %p267, %p268
      %p270 = scmp.ne.s32.totalorder %s262, %s264
      %p271 = scmp.eq.s32.totalorder %s44, 3
      %p272 = por %p270, %p271
      %p273 = scmp.ne.s32.totalorder %s264, %s265
      %p274 = scmp.eq.s32.totalorder %s44, 0
      %p275 = por %p273, %p274
      %p276 = scmp.ne.s32.totalorder %s264, %s265
      %p277 = scmp.eq.s32.totalorder %s45, 3
      %p278 = por %p276, %p277
      %p280 = scmp.ne.s32.totalorder %s265, %s279
      %p281 = scmp.eq.s32.totalorder %s45, 0
      %p282 = por %p280, %p281
      %s284 = sadd.s32 %s283, 1
      %p287 = scmp.eq.s32.totalorder %s39, 3
      %p288 = scmp.ne.s32.totalorder %s283, %s285
      %p289 = scmp.eq.s32.totalorder %s39, 0
      %p290 = por %p288, %p289
      %p291 = scmp.ne.s32.totalorder %s283, %s285
      %p292 = scmp.eq.s32.totalorder %s44, 3
      %p293 = por %p291, %p292
      %p294 = scmp.ne.s32.totalorder %s285, %s286
      %p295 = scmp.eq.s32.totalorder %s44, 0
      %p296 = por %p294, %p295
      %p297 = scmp.ne.s32.totalorder %s285, %s286
      %p298 = scmp.eq.s32.totalorder %s45, 3
      %p299 = por %p297, %p298
      %p301 = scmp.ne.s32.totalorder %s286, %s300
      %p302 = scmp.eq.s32.totalorder %s45, 0
      %p303 = por %p301, %p302
      %s305 = sadd.s32 %s304, 1
      %p308 = scmp.eq.s32.totalorder %s39, 3
      %p309 = scmp.ne.s32.totalorder %s304, %s306
      %p310 = scmp.eq.s32.totalorder %s39, 0
      %p311 = por %p309, %p310
      %p312 = scmp.ne.s32.totalorder %s304, %s306
      %p313 = scmp.eq.s32.totalorder %s44, 3
      %p314 = por %p312, %p313
      %p315 = scmp.ne.s32.totalorder %s306, %s307
      %p316 = scmp.eq.s32.totalorder %s44, 0
      %p317 = por %p315, %p316
      %p318 = scmp.ne.s32.totalorder %s306, %s307
      %p319 = scmp.eq.s32.totalorder %s45, 3
      %p320 = por %p318, %p319
      %p322 = scmp.ne.s32.totalorder %s307, %s321
      %p323 = scmp.eq.s32.totalorder %s45, 0
      %p324 = por %p322, %p323
      %s326 = sadd.s32 %s325, 1
      %p329 = scmp.eq.s32.totalorder %s39, 3
      %p330 = scmp.ne.s32.totalorder %s325, %s327
      %p331 = scmp.eq.s32.totalorder %s39, 0
      %p332 = por %p330, %p331
      %p333 = scmp.ne.s32.totalorder %s325, %s327
      %p334 = scmp.eq.s32.totalorder %s44, 3
      %p335 = por %p333, %p334
      %p336 = scmp.ne.s32.totalorder %s327, %s328
      %p337 = scmp.eq.s32.totalorder %s44, 0
      %p338 = por %p336, %p337
      %p339 = scmp.ne.s32.totalorder %s327, %s328
      %p340 = scmp.eq.s32.totalorder %s45, 3
      %p341 = por %p339, %p340
      %p343 = scmp.ne.s32.totalorder %s328, %s342
      %p344 = scmp.eq.s32.totalorder %s45, 0
      %p345 = por %p343, %p344
      %s347 = sadd.s32 %s346, 1
      %p350 = scmp.eq.s32.totalorder %s39, 3
      %p351 = scmp.ne.s32.totalorder %s346, %s348
      %p352 = scmp.eq.s32.totalorder %s39, 0
      %p353 = por %p351, %p352
      %p354 = scmp.ne.s32.totalorder %s346, %s348
      %p355 = scmp.eq.s32.totalorder %s44, 3
      %p356 = por %p354, %p355
      %p357 = scmp.ne.s32.totalorder %s348, %s349
      %p358 = scmp.eq.s32.totalorder %s44, 0
      %p359 = por %p357, %p358
      %p360 = scmp.ne.s32.totalorder %s348, %s349
      %p361 = scmp.eq.s32.totalorder %s45, 3
      %p362 = por %p360, %p361
      %p364 = scmp.ne.s32.totalorder %s349, %s363
      %p365 = scmp.eq.s32.totalorder %s45, 0
      %p366 = por %p364, %p365
      %s368 = sadd.s32 %s367, 1
      %p371 = scmp.eq.s32.totalorder %s39, 3
      %p372 = scmp.ne.s32.totalorder %s367, %s369
      %p373 = scmp.eq.s32.totalorder %s39, 0
      %p374 = por %p372, %p373
      %p375 = scmp.ne.s32.totalorder %s367, %s369
      %p376 = scmp.eq.s32.totalorder %s44, 3
      %p377 = por %p375, %p376
      %p378 = scmp.ne.s32.totalorder %s369, %s370
      %p379 = scmp.eq.s32.totalorder %s44, 0
      %p380 = por %p378, %p379
      %p381 = scmp.ne.s32.totalorder %s369, %s370
      %p382 = scmp.eq.s32.totalorder %s45, 3
      %p383 = por %p381, %p382
      %p385 = scmp.ne.s32.totalorder %s370, %s384
      %p386 = scmp.eq.s32.totalorder %s45, 0
      %p387 = por %p385, %p386
      %s389 = sadd.s32 %s388, 1
      %p392 = scmp.eq.s32.totalorder %s39, 3
      %p393 = scmp.ne.s32.totalorder %s388, %s390
      %p394 = scmp.eq.s32.totalorder %s39, 0
      %p395 = por %p393, %p394
      %p396 = scmp.ne.s32.totalorder %s388, %s390
      %p397 = scmp.eq.s32.totalorder %s44, 3
      %p398 = por %p396, %p397
      %p399 = scmp.ne.s32.totalorder %s390, %s391
      %p400 = scmp.eq.s32.totalorder %s44, 0
      %p401 = por %p399, %p400
      %p402 = scmp.ne.s32.totalorder %s390, %s391
      %p403 = scmp.eq.s32.totalorder %s45, 3
      %p404 = por %p402, %p403
      %p406 = scmp.ne.s32.totalorder %s391, %s405
      %p407 = scmp.eq.s32.totalorder %s45, 0
      %p408 = por %p406, %p407
      %s410 = sadd.s32 %s409, 1
      %p413 = scmp.eq.s32.totalorder %s39, 3
      %p414 = scmp.ne.s32.totalorder %s409, %s411
      %p415 = scmp.eq.s32.totalorder %s39, 0
      %p416 = por %p414, %p415
      %p417 = scmp.ne.s32.totalorder %s409, %s411
      %p418 = scmp.eq.s32.totalorder %s44, 3
      %p419 = por %p417, %p418
      %p420 = scmp.ne.s32.totalorder %s411, %s412
      %p421 = scmp.eq.s32.totalorder %s44, 0
      %p422 = por %p420, %p421
      %p423 = scmp.ne.s32.totalorder %s411, %s412
      %p424 = scmp.eq.s32.totalorder %s45, 3
      %p425 = por %p423, %p424
      %p427 = scmp.ne.s32.totalorder %s412, %s426
      %p428 = scmp.eq.s32.totalorder %s45, 0
      %p429 = por %p427, %p428
      %s431 = sadd.s32 %s430, 1
      %p434 = scmp.eq.s32.totalorder %s39, 3
      %p435 = scmp.ne.s32.totalorder %s430, %s432
      %p436 = scmp.eq.s32.totalorder %s39, 0
      %p437 = por %p435, %p436
      %p438 = scmp.ne.s32.totalorder %s430, %s432
      %p439 = scmp.eq.s32.totalorder %s44, 3
      %p440 = por %p438, %p439
      %p441 = scmp.ne.s32.totalorder %s432, %s433
      %p442 = scmp.eq.s32.totalorder %s44, 0
      %p443 = por %p441, %p442
      %p444 = scmp.ne.s32.totalorder %s432, %s433
      %p445 = scmp.eq.s32.totalorder %s45, 3
      %p446 = por %p444, %p445
      %p448 = scmp.ne.s32.totalorder %s433, %s447
      %p449 = scmp.eq.s32.totalorder %s45, 0
      %p450 = por %p448, %p449
      %s452 = sadd.s32 %s451, 1
      %p455 = scmp.eq.s32.totalorder %s39, 3
      %p456 = scmp.ne.s32.totalorder %s451, %s453
      %p457 = scmp.eq.s32.totalorder %s39, 0
      %p458 = por %p456, %p457
      %p459 = scmp.ne.s32.totalorder %s451, %s453
      %p460 = scmp.eq.s32.totalorder %s44, 3
      %p461 = por %p459, %p460
      %p462 = scmp.ne.s32.totalorder %s453, %s454
      %p463 = scmp.eq.s32.totalorder %s44, 0
      %p464 = por %p462, %p463
      %p465 = scmp.ne.s32.totalorder %s453, %s454
      %p466 = scmp.eq.s32.totalorder %s45, 3
      %p467 = por %p465, %p466
      %p469 = scmp.ne.s32.totalorder %s454, %s468
      %p470 = scmp.eq.s32.totalorder %s45, 0
      %p471 = por %p469, %p470
      %s473 = sadd.s32 %s472, 1
      %p476 = scmp.eq.s32.totalorder %s39, 3
      %p477 = scmp.ne.s32.totalorder %s472, %s474
      %p478 = scmp.eq.s32.totalorder %s39, 0
      %p479 = por %p477, %p478
      %p480 = scmp.ne.s32.totalorder %s472, %s474
      %p481 = scmp.eq.s32.totalorder %s44, 3
      %p482 = por %p480, %p481
      %p483 = scmp.ne.s32.totalorder %s474, %s475
      %p484 = scmp.eq.s32.totalorder %s44, 0
      %p485 = por %p483, %p484
      %p486 = scmp.ne.s32.totalorder %s474, %s475
      %p487 = scmp.eq.s32.totalorder %s45, 3
      %p488 = por %p486, %p487
      %p490 = scmp.ne.s32.totalorder %s475, %s489
      %p491 = scmp.eq.s32.totalorder %s45, 0
      %p492 = por %p490, %p491
      %s494 = sadd.s32 %s493, 1
      %p497 = scmp.eq.s32.totalorder %s39, 3
      %p498 = scmp.ne.s32.totalorder %s493, %s495
      %p499 = scmp.eq.s32.totalorder %s39, 0
      %p500 = por %p498, %p499
      %p501 = scmp.ne.s32.totalorder %s493, %s495
      %p502 = scmp.eq.s32.totalorder %s44, 3
      %p503 = por %p501, %p502
      %p504 = scmp.ne.s32.totalorder %s495, %s496
      %p505 = scmp.eq.s32.totalorder %s44, 0
      %p506 = por %p504, %p505
      %p507 = scmp.ne.s32.totalorder %s495, %s496
      %p508 = scmp.eq.s32.totalorder %s45, 3
      %p509 = por %p507, %p508
      %p511 = scmp.ne.s32.totalorder %s496, %s510
      %p512 = scmp.eq.s32.totalorder %s45, 0
      %p513 = por %p511, %p512
      %s515 = sadd.s32 %s514, 1
      %p518 = scmp.eq.s32.totalorder %s39, 3
      %p519 = scmp.ne.s32.totalorder %s514, %s516
      %p520 = scmp.eq.s32.totalorder %s39, 0
      %p521 = por %p519, %p520
      %p522 = scmp.ne.s32.totalorder %s514, %s516
      %p523 = scmp.eq.s32.totalorder %s44, 3
      %p524 = por %p522, %p523
      %p525 = scmp.ne.s32.totalorder %s516, %s517
      %p526 = scmp.eq.s32.totalorder %s44, 0
      %p527 = por %p525, %p526
      %p528 = scmp.ne.s32.totalorder %s516, %s517
      %p529 = scmp.eq.s32.totalorder %s45, 3
      %p530 = por %p528, %p529
      %p532 = scmp.ne.s32.totalorder %s517, %s531
      %p533 = scmp.eq.s32.totalorder %s45, 0
      %p534 = por %p532, %p533
      %s536 = sadd.s32 %s535, 1
      %p539 = scmp.eq.s32.totalorder %s39, 3
      %p540 = scmp.ne.s32.totalorder %s535, %s537
      %p541 = scmp.eq.s32.totalorder %s39, 0
      %p542 = por %p540, %p541
      %p543 = scmp.ne.s32.totalorder %s535, %s537
      %p544 = scmp.eq.s32.totalorder %s44, 3
      %p545 = por %p543, %p544
      %p546 = scmp.ne.s32.totalorder %s537, %s538
      %p547 = scmp.eq.s32.totalorder %s44, 0
      %p548 = por %p546, %p547
      %p549 = scmp.ne.s32.totalorder %s537, %s538
      %p550 = scmp.eq.s32.totalorder %s45, 3
      %p551 = por %p549, %p550
      %p553 = scmp.ne.s32.totalorder %s538, %s552
      %p554 = scmp.eq.s32.totalorder %s45, 0
      %p555 = por %p553, %p554
      %s557 = sadd.s32 %s556, 1
      %p560 = scmp.eq.s32.totalorder %s39, 3
      %p561 = scmp.ne.s32.totalorder %s556, %s558
      %p562 = scmp.eq.s32.totalorder %s39, 0
      %p563 = por %p561, %p562
      %p564 = scmp.ne.s32.totalorder %s556, %s558
      %p565 = scmp.eq.s32.totalorder %s44, 3
      %p566 = por %p564, %p565
      %p567 = scmp.ne.s32.totalorder %s558, %s559
      %p568 = scmp.eq.s32.totalorder %s44, 0
      %p569 = por %p567, %p568
      %p570 = scmp.ne.s32.totalorder %s558, %s559
      %p571 = scmp.eq.s32.totalorder %s45, 3
      %p572 = por %p570, %p571
      %p574 = scmp.ne.s32.totalorder %s559, %s573
      %p575 = scmp.eq.s32.totalorder %s45, 0
      %p576 = por %p574, %p575
      %s577 = ssub.s32 %s39, %s46
      %p578 = scmp.eq.s32.totalorder %s577, 0
      %s580 = sadd.s32 %s579, 1
      %s581 = scalar_select %p578, %s579, %s580
      %p584 = pneg %p578
      %p585 = scmp.eq.s32.totalorder %s39, 3
      %p586 = por %p584, %p585
      %p587 = scmp.ne.s32.totalorder %s579, %s582
      %p588 = scmp.eq.s32.totalorder %s39, 0
      %p589 = por %p587, %p588
      %p590 = scmp.ne.s32.totalorder %s579, %s582
      %p591 = scmp.eq.s32.totalorder %s44, 3
      %p592 = por %p590, %p591
      %p593 = scmp.ne.s32.totalorder %s582, %s583
      %p594 = scmp.eq.s32.totalorder %s44, 0
      %p595 = por %p593, %p594
      %p596 = scmp.ne.s32.totalorder %s582, %s583
      %p597 = scmp.eq.s32.totalorder %s45, 3
      %p598 = por %p596, %p597
      %p600 = scmp.ne.s32.totalorder %s583, %s599
      %p601 = scmp.eq.s32.totalorder %s45, 0
      %p602 = por %p600, %p601
      %s603 = ssub.s32 %s39, %s46
      %p604 = scmp.eq.s32.totalorder %s603, 0
      %s606 = sadd.s32 %s605, 1
      %s607 = scalar_select %p604, %s605, %s606
      %p610 = pneg %p604
      %p611 = scmp.eq.s32.totalorder %s39, 3
      %p612 = por %p610, %p611
      %p613 = scmp.ne.s32.totalorder %s605, %s608
      %p614 = scmp.eq.s32.totalorder %s39, 0
      %p615 = por %p613, %p614
      %p616 = scmp.ne.s32.totalorder %s605, %s608
      %p617 = scmp.eq.s32.totalorder %s44, 3
      %p618 = por %p616, %p617
      %p619 = scmp.ne.s32.totalorder %s608, %s609
      %p620 = scmp.eq.s32.totalorder %s44, 0
      %p621 = por %p619, %p620
      %p622 = scmp.ne.s32.totalorder %s608, %s609
      %p623 = scmp.eq.s32.totalorder %s45, 3
      %p624 = por %p622, %p623
      %p626 = scmp.ne.s32.totalorder %s609, %s625
      %p627 = scmp.eq.s32.totalorder %s45, 0
      %p628 = por %p626, %p627
      %p629 = scmp.le.s32.totalorder 1, %s39
      %p630 = scmp.lt.s32.totalorder %s39, 5
      %p631 = pnand %p629, %p630
      %p632 = pneg %p631
      // Predicated region
      $region9: #{tpu_custom_call.1} parent=5 // pred_check
        _
      $region10: #{tpu_custom_call.1} parent=5 // pred_check_branch
        %634 = sbr.rel (%p631) target = $region12
      $region11: #{tpu_custom_call.1} parent=5 // pred_region
        %s635 = ssub.s32 %s39, 1
        // Predicated region
        $region13: #{tpu_custom_call.1} parent=11 // pred_check
          %p636 = pneg %p86
        $region14: #{tpu_custom_call.1} parent=11 // pred_check_branch
          %638 = sbr.rel (%p636) target = $region16
        $region15: #{tpu_custom_call.1} parent=11 // pred_region
          _
        $region16: #{tpu_custom_call.1} parent=11 // pred_fallthru
          _
        // Predicated region
        $region17: #{tpu_custom_call.1} parent=11 // pred_check
          %p639 = pneg %p107
        $region18: #{tpu_custom_call.1} parent=11 // pred_check_branch
          %641 = sbr.rel (%p639) target = $region20
        $region19: #{tpu_custom_call.1} parent=11 // pred_region
          _
        $region20: #{tpu_custom_call.1} parent=11 // pred_fallthru
          _
        // Predicated region
        $region21: #{tpu_custom_call.1} parent=11 // pred_check
          %p642 = pneg %p128
        $region22: #{tpu_custom_call.1} parent=11 // pred_check_branch
          %644 = sbr.rel (%p642) target = $region24
        $region23: #{tpu_custom_call.1} parent=11 // pred_region
          _
        $region24: #{tpu_custom_call.1} parent=11 // pred_fallthru
          _
        // Predicated region
        $region25: #{tpu_custom_call.1} parent=11 // pred_check
          %p645 = pneg %p149
        $region26: #{tpu_custom_call.1} parent=11 // pred_check_branch
          %647 = sbr.rel (%p645) target = $region28
        $region27: #{tpu_custom_call.1} parent=11 // pred_region
          _
        $region28: #{tpu_custom_call.1} parent=11 // pred_fallthru
          _
        // Predicated region
        $region29: #{tpu_custom_call.1} parent=11 // pred_check
          %p648 = pneg %p170
        $region30: #{tpu_custom_call.1} parent=11 // pred_check_branch
          %650 = sbr.rel (%p648) target = $region32
        $region31: #{tpu_custom_call.1} parent=11 // pred_region
          _
        $region32: #{tpu_custom_call.1} parent=11 // pred_fallthru
          _
        // Predicated region
        $region33: #{tpu_custom_call.1} parent=11 // pred_check
          %p651 = pneg %p191
        $region34: #{tpu_custom_call.1} parent=11 // pred_check_branch
          %653 = sbr.rel (%p651) target = $region36
        $region35: #{tpu_custom_call.1} parent=11 // pred_region
          _
        $region36: #{tpu_custom_call.1} parent=11 // pred_fallthru
          _
        // Predicated region
        $region37: #{tpu_custom_call.1} parent=11 // pred_check
          %p654 = pneg %p212
        $region38: #{tpu_custom_call.1} parent=11 // pred_check_branch
          %656 = sbr.rel (%p654) target = $region40
        $region39: #{tpu_custom_call.1} parent=11 // pred_region
          _
        $region40: #{tpu_custom_call.1} parent=11 // pred_fallthru
          _
        // Predicated region
        $region41: #{tpu_custom_call.1} parent=11 // pred_check
          %p657 = pneg %p233
        $region42: #{tpu_custom_call.1} parent=11 // pred_check_branch
          %659 = sbr.rel (%p657) target = $region44
        $region43: #{tpu_custom_call.1} parent=11 // pred_region
          _
        $region44: #{tpu_custom_call.1} parent=11 // pred_fallthru
          _
        // Predicated region
        $region45: #{tpu_custom_call.1} parent=11 // pred_check
          %p660 = pneg %p254
        $region46: #{tpu_custom_call.1} parent=11 // pred_check_branch
          %662 = sbr.rel (%p660) target = $region48
        $region47: #{tpu_custom_call.1} parent=11 // pred_region
          _
        $region48: #{tpu_custom_call.1} parent=11 // pred_fallthru
          _
        // Predicated region
        $region49: #{tpu_custom_call.1} parent=11 // pred_check
          %p663 = pneg %p275
        $region50: #{tpu_custom_call.1} parent=11 // pred_check_branch
          %665 = sbr.rel (%p663) target = $region52
        $region51: #{tpu_custom_call.1} parent=11 // pred_region
          _
        $region52: #{tpu_custom_call.1} parent=11 // pred_fallthru
          _
        // Predicated region
        $region53: #{tpu_custom_call.1} parent=11 // pred_check
          %p666 = pneg %p296
        $region54: #{tpu_custom_call.1} parent=11 // pred_check_branch
          %668 = sbr.rel (%p666) target = $region56
        $region55: #{tpu_custom_call.1} parent=11 // pred_region
          _
        $region56: #{tpu_custom_call.1} parent=11 // pred_fallthru
          _
        // Predicated region
        $region57: #{tpu_custom_call.1} parent=11 // pred_check
          %p669 = pneg %p317
        $region58: #{tpu_custom_call.1} parent=11 // pred_check_branch
          %671 = sbr.rel (%p669) target = $region60
        $region59: #{tpu_custom_call.1} parent=11 // pred_region
          _
        $region60: #{tpu_custom_call.1} parent=11 // pred_fallthru
          _
        // Predicated region
        $region61: #{tpu_custom_call.1} parent=11 // pred_check
          %p672 = pneg %p338
        $region62: #{tpu_custom_call.1} parent=11 // pred_check_branch
          %674 = sbr.rel (%p672) target = $region64
        $region63: #{tpu_custom_call.1} parent=11 // pred_region
          _
        $region64: #{tpu_custom_call.1} parent=11 // pred_fallthru
          _
        // Predicated region
        $region65: #{tpu_custom_call.1} parent=11 // pred_check
          %p675 = pneg %p359
        $region66: #{tpu_custom_call.1} parent=11 // pred_check_branch
          %677 = sbr.rel (%p675) target = $region68
        $region67: #{tpu_custom_call.1} parent=11 // pred_region
          _
        $region68: #{tpu_custom_call.1} parent=11 // pred_fallthru
          _
        // Predicated region
        $region69: #{tpu_custom_call.1} parent=11 // pred_check
          %p678 = pneg %p380
        $region70: #{tpu_custom_call.1} parent=11 // pred_check_branch
          %680 = sbr.rel (%p678) target = $region72
        $region71: #{tpu_custom_call.1} parent=11 // pred_region
          _
        $region72: #{tpu_custom_call.1} parent=11 // pred_fallthru
          _
        // Predicated region
        $region73: #{tpu_custom_call.1} parent=11 // pred_check
          %p681 = pneg %p401
        $region74: #{tpu_custom_call.1} parent=11 // pred_check_branch
          %683 = sbr.rel (%p681) target = $region76
        $region75: #{tpu_custom_call.1} parent=11 // pred_region
          _
        $region76: #{tpu_custom_call.1} parent=11 // pred_fallthru
          _
        // Predicated region
        $region77: #{tpu_custom_call.1} parent=11 // pred_check
          %p684 = pneg %p422
        $region78: #{tpu_custom_call.1} parent=11 // pred_check_branch
          %686 = sbr.rel (%p684) target = $region80
        $region79: #{tpu_custom_call.1} parent=11 // pred_region
          _
        $region80: #{tpu_custom_call.1} parent=11 // pred_fallthru
          _
        // Predicated region
        $region81: #{tpu_custom_call.1} parent=11 // pred_check
          %p687 = pneg %p443
        $region82: #{tpu_custom_call.1} parent=11 // pred_check_branch
          %689 = sbr.rel (%p687) target = $region84
        $region83: #{tpu_custom_call.1} parent=11 // pred_region
          _
        $region84: #{tpu_custom_call.1} parent=11 // pred_fallthru
          _
        // Predicated region
        $region85: #{tpu_custom_call.1} parent=11 // pred_check
          %p690 = pneg %p464
        $region86: #{tpu_custom_call.1} parent=11 // pred_check_branch
          %692 = sbr.rel (%p690) target = $region88
        $region87: #{tpu_custom_call.1} parent=11 // pred_region
          _
        $region88: #{tpu_custom_call.1} parent=11 // pred_fallthru
          _
        // Predicated region
        $region89: #{tpu_custom_call.1} parent=11 // pred_check
          %p693 = pneg %p485
        $region90: #{tpu_custom_call.1} parent=11 // pred_check_branch
          %695 = sbr.rel (%p693) target = $region92
        $region91: #{tpu_custom_call.1} parent=11 // pred_region
          _
        $region92: #{tpu_custom_call.1} parent=11 // pred_fallthru
          _
        // Predicated region
        $region93: #{tpu_custom_call.1} parent=11 // pred_check
          %p696 = pneg %p506
        $region94: #{tpu_custom_call.1} parent=11 // pred_check_branch
          %698 = sbr.rel (%p696) target = $region96
        $region95: #{tpu_custom_call.1} parent=11 // pred_region
          _
        $region96: #{tpu_custom_call.1} parent=11 // pred_fallthru
          _
        // Predicated region
        $region97: #{tpu_custom_call.1} parent=11 // pred_check
          %p699 = pneg %p527
        $region98: #{tpu_custom_call.1} parent=11 // pred_check_branch
          %701 = sbr.rel (%p699) target = $region100
        $region99: #{tpu_custom_call.1} parent=11 // pred_region
          _
        $region100: #{tpu_custom_call.1} parent=11 // pred_fallthru
          _
        // Predicated region
        $region101: #{tpu_custom_call.1} parent=11 // pred_check
          %p702 = pneg %p548
        $region102: #{tpu_custom_call.1} parent=11 // pred_check_branch
          %704 = sbr.rel (%p702) target = $region104
        $region103: #{tpu_custom_call.1} parent=11 // pred_region
          _
        $region104: #{tpu_custom_call.1} parent=11 // pred_fallthru
          _
        // Predicated region
        $region105: #{tpu_custom_call.1} parent=11 // pred_check
          %p705 = pneg %p569
        $region106: #{tpu_custom_call.1} parent=11 // pred_check_branch
          %707 = sbr.rel (%p705) target = $region108
        $region107: #{tpu_custom_call.1} parent=11 // pred_region
          _
        $region108: #{tpu_custom_call.1} parent=11 // pred_fallthru
          _
      $region12: #{tpu_custom_call.1} parent=5 // pred_fallthru
        _
      %p708 = scmp.lt.s32.totalorder %s39, 4
      // Predicated region
      $region109: #{tpu_custom_call.1} parent=5 // pred_check
        %p709 = pneg %p708
      $region110: #{tpu_custom_call.1} parent=5 // pred_check_branch
        %711 = sbr.rel (%p709) target = $region112
      $region111: #{tpu_custom_call.1} parent=5 // pred_region
        // Predicated region
        $region113: #{tpu_custom_call.1} parent=111 // pred_check
          %p712 = pneg %p59
        $region114: #{tpu_custom_call.1} parent=111 // pred_check_branch
          %714 = sbr.rel (%p712) target = $region116
        $region115: #{tpu_custom_call.1} parent=111 // pred_region
          %s715 = smul.u32 4, %s39
          %p716 = scmp.lt.s32.totalorder %s715, 15
          %s717 = scalar_select %p716, %s715, 15
          %s718 = smul.addr %s717, 4
          %s719 = scalar_lea.vmem %s0, %s718
          %s720 = smul.u32 4, %s39
        $region116: #{tpu_custom_call.1} parent=111 // pred_fallthru
          _
      $region112: #{tpu_custom_call.1} parent=5 // pred_fallthru
        _
      %p721 = scmp.le.s32.totalorder 1, %s39
      %p722 = scmp.lt.s32.totalorder %s39, 5
      %p723 = pnand %p721, %p722
      %p724 = pneg %p723
      // Predicated region
      $region117: #{tpu_custom_call.1} parent=5 // pred_check
        _
      $region118: #{tpu_custom_call.1} parent=5 // pred_check_branch
        %726 = sbr.rel (%p723) target = $region120
      $region119: #{tpu_custom_call.1} parent=5 // pred_region
        %s727 = ssub.s32 %s39, 1
        %s728 = smul.u32 4, %s44
        %p729 = scmp.lt.s32.totalorder %s728, 15
        %s730 = scalar_select %p729, %s728, 15
        %s731 = smul.addr %s730, 4
        %s732 = scalar_lea.vmem %s0, %s731
        %p733 = pneg %p65
        %p734 = pneg %p62
        %p735 = pneg %p86
        %p736 = pneg %p83
        %p737 = pneg %p107
        %p738 = pneg %p104
        %p739 = pneg %p128
        %p740 = pneg %p125
        %p741 = pneg %p149
        %p742 = pneg %p146
        %p743 = pneg %p170
        %p744 = pneg %p167
        %p745 = pneg %p191
        %p746 = pneg %p188
        %p747 = pneg %p212
        %p748 = pneg %p209
        %p749 = pneg %p233
        %p750 = pneg %p230
        %p751 = pneg %p254
        %p752 = pneg %p251
        %p753 = pneg %p275
        %p754 = pneg %p272
        %p755 = pneg %p296
        %p756 = pneg %p293
        %p757 = pneg %p317
        %p758 = pneg %p314
        %p759 = pneg %p338
        %p760 = pneg %p335
        %p761 = pneg %p359
        %p762 = pneg %p356
        %p763 = pneg %p380
        %p764 = pneg %p377
        %p765 = pneg %p401
        %p766 = pneg %p398
        %p767 = pneg %p422
        %p768 = pneg %p419
        %p769 = pneg %p443
        %p770 = pneg %p440
        %p771 = pneg %p464
        %p772 = pneg %p461
        %p773 = pneg %p485
        %p774 = pneg %p482
        %p775 = pneg %p506
        %p776 = pneg %p503
        %p777 = pneg %p527
        %p778 = pneg %p524
        %p779 = pneg %p548
        %p780 = pneg %p545
        %p781 = pneg %p569
        %p782 = pneg %p566
        %p783 = pneg %p595
        %p784 = pneg %p592
        %s785 = sand.u32 %s582, 1
        %s786 = scalar_lea.sflag [#allocation3], %s785
        %s787 = sand.u32 %s582, 1
        %s788 = smul.addr %s787, 16
        %s789 = scalar_lea.vmem [#allocation2], %s788
        %p790 = pneg %p621
        %p791 = pneg %p618
        %s792 = sand.u32 %s608, 1
        %s793 = scalar_lea.sflag [#allocation5], %s792
        %s794 = sand.u32 %s608, 1
        %s795 = smul.addr %s794, 8
        %s796 = scalar_lea.vmem [#allocation4], %s795
        %s797 = smul.u32 4, %s44
        %p798 = scmp.lt.s32.totalorder %s797, 15
        %s799 = scalar_select %p798, %s797, 15
        %s800 = smul.addr %s799, 4
        %s801 = scalar_lea.vmem %s0, %s800
        %s802 = smul.u32 4, %s44
        %s803 = smul.u32 4, %s44
        %v805 = vld [vmem:[%s801] sm:$0xf]
        %v806 = vld [vmem:[%s801 + $0x4] sm:$0xf]
        %v807 = vld [vmem:[%s801 + $0x8] sm:$0xf]
        %v808 = vld [vmem:[%s801 + $0xc] sm:$0xf]
        %v809 = vld [vmem:[%s1] sm:$0x3]
        %v810 = vld [vmem:[%s2] sm:$0x1]
        %v812 = vlaneseq
        %v813 = vshrl.u32 %v812, 7
        %v814 = vsub.s32 0, %v813
        %v815 = vrot.slane %v810, %v814
        %v821 = vunpack.c.l.b16 %v805
        %v822 = vunpack.c.l.b16 %v806
        %v823 = vunpack.c.l.b16 %v807
        %v824 = vunpack.c.l.b16 %v808
        %v825 = vpack.c.b16 %v822, %v821
        %v826 = vpack.c.b16 %v824, %v823
        %vm827 = vcmask 31744
        %v829 = vsel %vm827, %v825, 0
        %v832 = vsel %vm827, %v826, 0
        %vm834 = vcmask 1041408
        %v836 = vsel %vm834, %v809, 0
        %838 = vmatprep.subr.bf16.mxu0 0
        %839 = vmatpush1.bf16.msra.mxu0 0
        %840 = vmatprep.subr.bf16.mxu0 0
        %841 = vmatpush1.bf16.msra.mxu0 0
        %842 = vmatprep.subr.bf16.mxu0 0
        %843 = vmatpush1.bf16.msra.mxu0 0
        %844 = vmatprep.subr.bf16.mxu0 0
        %845 = vmatpush1.bf16.msra.mxu0 0
        %846 = vmatprep.subr.bf16.mxu0 0
        %847 = vmatpush1.bf16.msra.mxu0 0
        %848 = vmatprep.subr.bf16.mxu0 0
        %849 = vmatpush1.bf16.msra.mxu0 0
        %850 = vmatprep.subr.bf16.mxu0 0
        %851 = vmatpush1.bf16.msra.mxu0 0
        %852 = vmatprep.subr.bf16.mxu0 0
        %853 = vmatpush1.bf16.msra.mxu0 %v836
        %854 = vmatprep.subr.bf16.mxu0 0
        %855 = vmatpush2.bf16.msra.mxu0 0
        %856 = vmatprep.subr.bf16.mxu0 0
        %857 = vmatpush2.bf16.msra.mxu0 0
        %858 = vmatprep.subr.bf16.mxu0 0
        %859 = vmatpush2.bf16.msra.mxu0 0
        %860 = vmatprep.subr.bf16.mxu0 0
        %861 = vmatpush2.bf16.msra.mxu0 0
        %862 = vmatprep.subr.bf16.mxu0 0
        %863 = vmatpush2.bf16.msra.mxu0 0
        %864 = vmatprep.subr.bf16.mxu0 0
        %865 = vmatpush2.bf16.msra.mxu0 0
        %866 = vmatprep.subr.bf16.mxu0 0
        %867 = vmatpush2.bf16.msra.mxu0 0
        %868 = vmatprep.subr.bf16.mxu0 0
        %869 = vmatpush2.bf16.msra.mxu0 0
        %870 = vmatprep.mubr.bf16.mxu0 0
        %871 = vmatmul.mubr.bf16.gmra.mxu0 %v829
        %v872 = vpop.f32.mrf.mxu0
        %v873 = vadd.f32 %v815, %v872
        %v874 = vpop.f32.mrf.mxu0
        %v875 = vpop.f32.mrf.mxu0
        %v876 = vadd.f32 %v815, %v875
        %v877 = vpop.f32.mrf.mxu0
        %878 = vmatprep.mubr.bf16.mxu0 0
        %879 = vmatmul.mubr.bf16.gmra.mxu0 %v832
        %v880 = vpop.f32.mrf.mxu0
        %v881 = vadd.f32 %v815, %v880
        %v882 = vpop.f32.mrf.mxu0
        %v883 = vpop.f32.mrf.mxu0
        %v884 = vadd.f32 %v815, %v883
        %v885 = vpop.f32.mrf.mxu0
        %886 = vdwg.mxu0
        %vm887 = vcmp.ge.f32.partialorder %v873, 0.0
        %vm888 = vcmp.ge.f32.partialorder %v876, 0.0
        %vm889 = vcmp.ge.f32.partialorder %v881, 0.0
        %vm890 = vcmp.ge.f32.partialorder %v884, 0.0
        %v891 = vmul.f32 %v873, 0.2
        %v892 = vmul.f32 %v876, 0.2
        %v893 = vmul.f32 %v881, 0.2
        %v894 = vmul.f32 %v884, 0.2
        %v895 = vsel %vm887, %v873, %v891
        %v896 = vsel %vm888, %v876, %v892
        %v897 = vsel %vm889, %v881, %v893
        %v898 = vsel %vm890, %v884, %v894
        %v899 = vmul.f32 %v895, %v895
        %v900 = vmul.f32 %v896, %v896
        %v901 = vmul.f32 %v897, %v897
        %v902 = vmul.f32 %v898, %v898
        %v903 = vld [vmem:[%s5] sm:$0xff]
        %v904 = vld [vmem:[%s5 + $0x8] sm:$0xff]
        %v905 = vld [vmem:[%s5 + $0x10] sm:$0xff]
        %v906 = vld [vmem:[%s5 + $0x18] sm:$0xff]
        %vm907 = vcmask 261120
        %v909 = vsel %vm907, %v895, 0
        %v912 = vsel %vm907, %v896, 0
        %v915 = vsel %vm907, %v897, 0
        %v918 = vsel %vm907, %v898, 0
        %v921 = vsel %vm907, %v899, 0
        %v924 = vsel %vm907, %v900, 0
        %v927 = vsel %vm907, %v901, 0
        %v930 = vsel %vm907, %v902, 0
        %932 = vmatprep.subr.mxu0 0.0
        %933 = vmatpush1.msra.mxu0 0.0
        %934 = vmatprep.subr.mxu0 0.0
        %935 = vmatpush1.msra.mxu0 0.0
        %936 = vmatprep.subr.mxu0 0.0
        %937 = vmatpush1.msra.mxu0 0.0
        %938 = vmatprep.subr.mxu0 0.0
        %939 = vmatpush1.msra.mxu0 0.0
        %940 = vmatprep.subr.mxu0 0.0
        %941 = vmatpush1.msra.mxu0 0.0
        %942 = vmatprep.subr.mxu0 0.0
        %943 = vmatpush1.msra.mxu0 0.0
        %944 = vmatprep.subr.mxu0 0.0
        %945 = vmatpush1.msra.mxu0 0.0
        %946 = vmatprep.subr.mxu0 0.0
        %947 = vmatpush1.msra.mxu0 0.0
        %948 = vmatprep.subr.mxu0 0.0
        %949 = vmatpush1.msra.mxu0 0.0
        %950 = vmatprep.subr.mxu0 0.0
        %951 = vmatpush1.msra.mxu0 0.0
        %952 = vmatprep.subr.mxu0 0.0
        %953 = vmatpush1.msra.mxu0 0.0
        %954 = vmatprep.subr.mxu0 0.0
        %955 = vmatpush1.msra.mxu0 0.0
        %956 = vmatprep.subr.mxu0 0.0
        %957 = vmatpush1.msra.mxu0 %v906
        %958 = vmatprep.subr.mxu0 0.0
        %959 = vmatpush1.msra.mxu0 %v905
        %960 = vmatprep.subr.mxu0 0.0
        %961 = vmatpush1.msra.mxu0 %v904
        %962 = vmatprep.subr.mxu0 0.0
        %963 = vmatpush1.msra.mxu0 %v903
        %964 = vmatprep.subr.mxu0 0.0
        %965 = vmatpush2.msra.mxu0 0.0
        %966 = vmatprep.subr.mxu0 0.0
        %967 = vmatpush2.msra.mxu0 0.0
        %968 = vmatprep.subr.mxu0 0.0
        %969 = vmatpush2.msra.mxu0 0.0
        %970 = vmatprep.subr.mxu0 0.0
        %971 = vmatpush2.msra.mxu0 0.0
        %972 = vmatprep.subr.mxu0 0.0
        %973 = vmatpush2.msra.mxu0 0.0
        %974 = vmatprep.subr.mxu0 0.0
        %975 = vmatpush2.msra.mxu0 0.0
        %976 = vmatprep.subr.mxu0 0.0
        %977 = vmatpush2.msra.mxu0 0.0
        %978 = vmatprep.subr.mxu0 0.0
        %979 = vmatpush2.msra.mxu0 0.0
        %980 = vmatprep.subr.mxu0 0.0
        %981 = vmatpush2.msra.mxu0 0.0
        %982 = vmatprep.subr.mxu0 0.0
        %983 = vmatpush2.msra.mxu0 0.0
        %984 = vmatprep.subr.mxu0 0.0
        %985 = vmatpush2.msra.mxu0 0.0
        %986 = vmatprep.subr.mxu0 0.0
        %987 = vmatpush2.msra.mxu0 0.0
        %988 = vmatprep.subr.mxu0 0.0
        %989 = vmatpush2.msra.mxu0 0.0
        %990 = vmatprep.subr.mxu0 0.0
        %991 = vmatpush2.msra.mxu0 0.0
        %992 = vmatprep.subr.mxu0 0.0
        %993 = vmatpush2.msra.mxu0 0.0
        %994 = vmatprep.subr.mxu0 0.0
        %995 = vmatpush2.msra.mxu0 0.0
        %996 = vmatprep.mubr.f32.mxu0 0.0
        %997 = vmatmul.mubr.f32.gmra.mxu0 %v909
        %v998 = vpop.f32.mrf.mxu0
        %v999 = vadd.f32 0.0, %v998
        %v1000 = vpop.f32.mrf.mxu0
        %1001 = vmatprep.mubr.f32.mxu0 0.0
        %1002 = vmatmul.mubr.f32.gmra.mxu0 %v912
        %v1003 = vpop.f32.mrf.mxu0
        %v1004 = vadd.f32 0.0, %v1003
        %v1005 = vpop.f32.mrf.mxu0
        %1006 = vmatprep.mubr.f32.mxu0 0.0
        %1007 = vmatmul.mubr.f32.gmra.mxu0 %v915
        %v1008 = vpop.f32.mrf.mxu0
        %v1009 = vadd.f32 0.0, %v1008
        %v1010 = vpop.f32.mrf.mxu0
        %1011 = vmatprep.mubr.f32.mxu0 0.0
        %1012 = vmatmul.mubr.f32.gmra.mxu0 %v918
        %v1013 = vpop.f32.mrf.mxu0
        %v1014 = vadd.f32 0.0, %v1013
        %v1015 = vpop.f32.mrf.mxu0
        %1016 = vmatprep.mubr.f32.mxu0 0.0
        %1017 = vmatmul.mubr.f32.gmra.mxu0 %v921
        %v1018 = vpop.f32.mrf.mxu0
        %v1019 = vadd.f32 0.0, %v1018
        %v1020 = vpop.f32.mrf.mxu0
        %1021 = vmatprep.mubr.f32.mxu0 0.0
        %1022 = vmatmul.mubr.f32.gmra.mxu0 %v924
        %v1023 = vpop.f32.mrf.mxu0
        %v1024 = vadd.f32 0.0, %v1023
        %v1025 = vpop.f32.mrf.mxu0
        %1026 = vmatprep.mubr.f32.mxu0 0.0
        %1027 = vmatmul.mubr.f32.gmra.mxu0 %v927
        %v1028 = vpop.f32.mrf.mxu0
        %v1029 = vadd.f32 0.0, %v1028
        %v1030 = vpop.f32.mrf.mxu0
        %1031 = vmatprep.mubr.f32.mxu0 0.0
        %1032 = vmatmul.mubr.f32.gmra.mxu0 %v930
        %v1033 = vpop.f32.mrf.mxu0
        %v1034 = vadd.f32 0.0, %v1033
        %v1035 = vpop.f32.mrf.mxu0
        %1036 = vdwg.mxu0
        %v1037 = vld [vmem:[%s6] sm:$0x1]
        %vm1038 = vcmask 7168
        %v1040 = vsel %vm1038, %v999, 0
        %v1043 = vsel %vm1038, %v1004, 0
        %v1046 = vsel %vm1038, %v1009, 0
        %v1049 = vsel %vm1038, %v1014, 0
        %v1052 = vsel %vm1038, %v1019, 0
        %v1055 = vsel %vm1038, %v1024, 0
        %v1058 = vsel %vm1038, %v1029, 0
        %v1061 = vsel %vm1038, %v1034, 0
        %vm1063 = vcmask 1040384
        %v1065 = vsel %vm1063, %v1037, 0
        %1067 = vmatprep.subr.mxu0 0.0
        %1068 = vmatpush1.msra.mxu0 0.0
        %1069 = vmatprep.subr.mxu0 0.0
        %1070 = vmatpush1.msra.mxu0 0.0
        %1071 = vmatprep.subr.mxu0 0.0
        %1072 = vmatpush1.msra.mxu0 0.0
        %1073 = vmatprep.subr.mxu0 0.0
        %1074 = vmatpush1.msra.mxu0 0.0
        %1075 = vmatprep.subr.mxu0 0.0
        %1076 = vmatpush1.msra.mxu0 0.0
        %1077 = vmatprep.subr.mxu0 0.0
        %1078 = vmatpush1.msra.mxu0 0.0
        %1079 = vmatprep.subr.mxu0 0.0
        %1080 = vmatpush1.msra.mxu0 0.0
        %1081 = vmatprep.subr.mxu0 0.0
        %1082 = vmatpush1.msra.mxu0 0.0
        %1083 = vmatprep.subr.mxu0 0.0
        %1084 = vmatpush1.msra.mxu0 0.0
        %1085 = vmatprep.subr.mxu0 0.0
        %1086 = vmatpush1.msra.mxu0 0.0
        %1087 = vmatprep.subr.mxu0 0.0
        %1088 = vmatpush1.msra.mxu0 0.0
        %1089 = vmatprep.subr.mxu0 0.0
        %1090 = vmatpush1.msra.mxu0 0.0
        %1091 = vmatprep.subr.mxu0 0.0
        %1092 = vmatpush1.msra.mxu0 0.0
        %1093 = vmatprep.subr.mxu0 0.0
        %1094 = vmatpush1.msra.mxu0 0.0
        %1095 = vmatprep.subr.mxu0 0.0
        %1096 = vmatpush1.msra.mxu0 0.0
        %1097 = vmatprep.subr.mxu0 0.0
        %1098 = vmatpush1.msra.mxu0 %v1065
        %1099 = vmatprep.subr.mxu0 0.0
        %1100 = vmatpush2.msra.mxu0 0.0
        %1101 = vmatprep.subr.mxu0 0.0
        %1102 = vmatpush2.msra.mxu0 0.0
        %1103 = vmatprep.subr.mxu0 0.0
        %1104 = vmatpush2.msra.mxu0 0.0
        %1105 = vmatprep.subr.mxu0 0.0
        %1106 = vmatpush2.msra.mxu0 0.0
        %1107 = vmatprep.subr.mxu0 0.0
        %1108 = vmatpush2.msra.mxu0 0.0
        %1109 = vmatprep.subr.mxu0 0.0
        %1110 = vmatpush2.msra.mxu0 0.0
        %1111 = vmatprep.subr.mxu0 0.0
        %1112 = vmatpush2.msra.mxu0 0.0
        %1113 = vmatprep.subr.mxu0 0.0
        %1114 = vmatpush2.msra.mxu0 0.0
        %1115 = vmatprep.subr.mxu0 0.0
        %1116 = vmatpush2.msra.mxu0 0.0
        %1117 = vmatprep.subr.mxu0 0.0
        %1118 = vmatpush2.msra.mxu0 0.0
        %1119 = vmatprep.subr.mxu0 0.0
        %1120 = vmatpush2.msra.mxu0 0.0
        %1121 = vmatprep.subr.mxu0 0.0
        %1122 = vmatpush2.msra.mxu0 0.0
        %1123 = vmatprep.subr.mxu0 0.0
        %1124 = vmatpush2.msra.mxu0 0.0
        %1125 = vmatprep.subr.mxu0 0.0
        %1126 = vmatpush2.msra.mxu0 0.0
        %1127 = vmatprep.subr.mxu0 0.0
        %1128 = vmatpush2.msra.mxu0 0.0
        %1129 = vmatprep.subr.mxu0 0.0
        %1130 = vmatpush2.msra.mxu0 0.0
        %1131 = vmatprep.mubr.f32.mxu0 0.0
        %1132 = vmatmul.mubr.f32.gmra.mxu0 %v1040
        %v1133 = vpop.f32.mrf.mxu0
        %v1134 = vadd.f32 0.0, %v1133
        %v1135 = vpop.f32.mrf.mxu0
        %1136 = vmatprep.mubr.f32.mxu0 0.0
        %1137 = vmatmul.mubr.f32.gmra.mxu0 %v1043
        %v1138 = vpop.f32.mrf.mxu0
        %v1139 = vadd.f32 0.0, %v1138
        %v1140 = vpop.f32.mrf.mxu0
        %1141 = vmatprep.mubr.f32.mxu0 0.0
        %1142 = vmatmul.mubr.f32.gmra.mxu0 %v1046
        %v1143 = vpop.f32.mrf.mxu0
        %v1144 = vadd.f32 0.0, %v1143
        %v1145 = vpop.f32.mrf.mxu0
        %1146 = vmatprep.mubr.f32.mxu0 0.0
        %1147 = vmatmul.mubr.f32.gmra.mxu0 %v1049
        %v1148 = vpop.f32.mrf.mxu0
        %v1149 = vadd.f32 0.0, %v1148
        %v1150 = vpop.f32.mrf.mxu0
        %1151 = vmatprep.mubr.f32.mxu0 0.0
        %1152 = vmatmul.mubr.f32.gmra.mxu0 %v1052
        %v1153 = vpop.f32.mrf.mxu0
        %v1154 = vadd.f32 0.0, %v1153
        %v1155 = vpop.f32.mrf.mxu0
        %1156 = vmatprep.mubr.f32.mxu0 0.0
        %1157 = vmatmul.mubr.f32.gmra.mxu0 %v1055
        %v1158 = vpop.f32.mrf.mxu0
        %v1159 = vadd.f32 0.0, %v1158
        %v1160 = vpop.f32.mrf.mxu0
        %1161 = vmatprep.mubr.f32.mxu0 0.0
        %1162 = vmatmul.mubr.f32.gmra.mxu0 %v1058
        %v1163 = vpop.f32.mrf.mxu0
        %v1164 = vadd.f32 0.0, %v1163
        %v1165 = vpop.f32.mrf.mxu0
        %1166 = vmatprep.mubr.f32.mxu0 0.0
        %1167 = vmatmul.mubr.f32.gmra.mxu0 %v1061
        %v1168 = vpop.f32.mrf.mxu0
        %v1169 = vadd.f32 0.0, %v1168
        %v1170 = vpop.f32.mrf.mxu0
        %1171 = vdwg.mxu0
        %v1172 = vmul.f32 %v1134, %v1134
        %v1173 = vmul.f32 %v1139, %v1139
        %v1174 = vmul.f32 %v1144, %v1144
        %v1175 = vmul.f32 %v1149, %v1149
        %v1176 = vsub.f32 %v1154, %v1172
        %v1177 = vsub.f32 %v1159, %v1173
        %v1178 = vsub.f32 %v1164, %v1174
        %v1179 = vsub.f32 %v1169, %v1175
        %v1180 = vsub.f32 %v895, %v1134
        %v1181 = vsub.f32 %v896, %v1139
        %v1182 = vsub.f32 %v897, %v1144
        %v1183 = vsub.f32 %v898, %v1149
        %v1184 = vadd.f32 %v1176, 1e-05
        %v1185 = vadd.f32 %v1177, 1e-05
        %v1186 = vadd.f32 %v1178, 1e-05
        %v1187 = vadd.f32 %v1179, 1e-05
        %v1188 = vrsqrt.pop %v1184
        %v1189 = vrsqrt.pop %v1185
        %v1190 = vrsqrt.pop %v1186
        %v1191 = vrsqrt.pop %v1187
        %v1192 = vmul.f32 %v1180, %v1188
        %v1193 = vmul.f32 %v1181, %v1189
        %v1194 = vmul.f32 %v1182, %v1190
        %v1195 = vmul.f32 %v1183, %v1191
        %v1196 = vld [vmem:[%s3] sm:$0x1]
        %v1198 = vlaneseq
        %v1199 = vshrl.u32 %v1198, 7
        %v1200 = vsub.s32 0, %v1199
        %v1201 = vrot.slane %v1196, %v1200
        %v1203 = vmul.f32 %v1192, %v1201
        %v1204 = vmul.f32 %v1193, %v1201
        %v1205 = vmul.f32 %v1194, %v1201
        %v1206 = vmul.f32 %v1195, %v1201
        %v1207 = vld [vmem:[%s4] sm:$0x1]
        %v1209 = vlaneseq
        %v1210 = vshrl.u32 %v1209, 7
        %v1211 = vsub.s32 0, %v1210
        %v1212 = vrot.slane %v1207, %v1211
        %v1214 = vadd.f32 %v1203, %v1212
        %v1215 = vadd.f32 %v1204, %v1212
        %v1216 = vadd.f32 %v1205, %v1212
        %v1217 = vadd.f32 %v1206, %v1212
        %v1218 = vpack.c.bf16 %v1215, %v1214
        %v1219 = vpack.c.bf16 %v1217, %v1216
        %v1220 = vld [vmem:[%s7] sm:$0xf]
        %v1221 = vld [vmem:[%s7 + $0x4] sm:$0xf]
        %v1222 = vld [vmem:[%s7 + $0x8] sm:$0xf]
        %v1223 = vld [vmem:[%s7 + $0xc] sm:$0xf]
        %v1224 = vld [vmem:[%s8] sm:$0x1]
        %v1226 = vlaneseq
        %v1227 = vshrl.u32 %v1226, 7
        %v1228 = vsub.s32 0, %v1227
        %v1229 = vrot.slane %v1224, %v1228
        %v1235 = vunpack.c.l.b16 %v1220
        %v1236 = vunpack.c.l.b16 %v1221
        %v1237 = vunpack.c.l.b16 %v1222
        %v1238 = vunpack.c.l.b16 %v1223
        %v1239 = vpack.c.b16 %v1236, %v1235
        %v1240 = vpack.c.b16 %v1238, %v1237
        %v1244 = vsel %vm907, %v1218, 0
        %v1247 = vsel %vm907, %v1219, 0
        %1249 = vmatprep.subr.bf16.mxu0 0
        %1250 = vmatpush1.bf16.msra.mxu0 0
        %1251 = vmatprep.subr.bf16.mxu0 0
        %1252 = vmatpush1.bf16.msra.mxu0 0
        %1253 = vmatprep.subr.bf16.mxu0 0
        %1254 = vmatpush1.bf16.msra.mxu0 0
        %1255 = vmatprep.subr.bf16.mxu0 0
        %1256 = vmatpush1.bf16.msra.mxu0 0
        %1257 = vmatprep.subr.bf16.mxu0 0
        %1258 = vmatpush1.bf16.msra.mxu0 0
        %1259 = vmatprep.subr.bf16.mxu0 0
        %1260 = vmatpush1.bf16.msra.mxu0 0
        %1261 = vmatprep.subr.bf16.mxu0 0
        %1262 = vmatpush1.bf16.msra.mxu0 %v1240
        %1263 = vmatprep.subr.bf16.mxu0 0
        %1264 = vmatpush1.bf16.msra.mxu0 %v1239
        %1265 = vmatprep.subr.bf16.mxu0 0
        %1266 = vmatpush2.bf16.msra.mxu0 0
        %1267 = vmatprep.subr.bf16.mxu0 0
        %1268 = vmatpush2.bf16.msra.mxu0 0
        %1269 = vmatprep.subr.bf16.mxu0 0
        %1270 = vmatpush2.bf16.msra.mxu0 0
        %1271 = vmatprep.subr.bf16.mxu0 0
        %1272 = vmatpush2.bf16.msra.mxu0 0
        %1273 = vmatprep.subr.bf16.mxu0 0
        %1274 = vmatpush2.bf16.msra.mxu0 0
        %1275 = vmatprep.subr.bf16.mxu0 0
        %1276 = vmatpush2.bf16.msra.mxu0 0
        %1277 = vmatprep.subr.bf16.mxu0 0
        %1278 = vmatpush2.bf16.msra.mxu0 0
        %1279 = vmatprep.subr.bf16.mxu0 0
        %1280 = vmatpush2.bf16.msra.mxu0 0
        %1281 = vmatprep.mubr.bf16.mxu0 0
        %1282 = vmatmul.mubr.bf16.gmra.mxu0 %v1244
        %v1283 = vpop.f32.mrf.mxu0
        %v1284 = vadd.f32 %v1229, %v1283
        %v1285 = vpop.f32.mrf.mxu0
        %v1286 = vpop.f32.mrf.mxu0
        %v1287 = vadd.f32 %v1229, %v1286
        %v1288 = vpop.f32.mrf.mxu0
        %1289 = vmatprep.mubr.bf16.mxu0 0
        %1290 = vmatmul.mubr.bf16.gmra.mxu0 %v1247
        %v1291 = vpop.f32.mrf.mxu0
        %v1292 = vadd.f32 %v1229, %v1291
        %v1293 = vpop.f32.mrf.mxu0
        %v1294 = vpop.f32.mrf.mxu0
        %v1295 = vadd.f32 %v1229, %v1294
        %v1296 = vpop.f32.mrf.mxu0
        %1297 = vdwg.mxu0
        %vm1298 = vcmp.ge.f32.partialorder %v1284, 0.0
        %vm1299 = vcmp.ge.f32.partialorder %v1287, 0.0
        %vm1300 = vcmp.ge.f32.partialorder %v1292, 0.0
        %vm1301 = vcmp.ge.f32.partialorder %v1295, 0.0
        %v1302 = vmul.f32 %v1284, 0.2
        %v1303 = vmul.f32 %v1287, 0.2
        %v1304 = vmul.f32 %v1292, 0.2
        %v1305 = vmul.f32 %v1295, 0.2
        %v1306 = vsel %vm1298, %v1284, %v1302
        %v1307 = vsel %vm1299, %v1287, %v1303
        %v1308 = vsel %vm1300, %v1292, %v1304
        %v1309 = vsel %vm1301, %v1295, %v1305
        %v1310 = vmul.f32 %v1306, %v1306
        %v1311 = vmul.f32 %v1307, %v1307
        %v1312 = vmul.f32 %v1308, %v1308
        %v1313 = vmul.f32 %v1309, %v1309
        %v1314 = vld [vmem:[%s11] sm:$0xff]
        %v1315 = vld [vmem:[%s11 + $0x8] sm:$0xff]
        %v1316 = vld [vmem:[%s11 + $0x10] sm:$0xff]
        %v1317 = vld [vmem:[%s11 + $0x18] sm:$0xff]
        %v1318 = vld [vmem:[%s11 + $0x20] sm:$0xff]
        %v1319 = vld [vmem:[%s11 + $0x28] sm:$0xff]
        %v1320 = vld [vmem:[%s11 + $0x30] sm:$0xff]
        %v1321 = vld [vmem:[%s11 + $0x38] sm:$0xff]
        %vm1322 = vcmask 523264
        %v1324 = vsel %vm1322, %v1306, 0
        %v1327 = vsel %vm1322, %v1307, 0
        %v1330 = vsel %vm1322, %v1308, 0
        %v1333 = vsel %vm1322, %v1309, 0
        %v1336 = vsel %vm1322, %v1310, 0
        %v1339 = vsel %vm1322, %v1311, 0
        %v1342 = vsel %vm1322, %v1312, 0
        %v1345 = vsel %vm1322, %v1313, 0
        %1347 = vmatprep.subr.mxu0 0.0
        %1348 = vmatpush1.msra.mxu0 0.0
        %1349 = vmatprep.subr.mxu0 0.0
        %1350 = vmatpush1.msra.mxu0 0.0
        %1351 = vmatprep.subr.mxu0 0.0
        %1352 = vmatpush1.msra.mxu0 0.0
        %1353 = vmatprep.subr.mxu0 0.0
        %1354 = vmatpush1.msra.mxu0 0.0
        %1355 = vmatprep.subr.mxu0 0.0
        %1356 = vmatpush1.msra.mxu0 0.0
        %1357 = vmatprep.subr.mxu0 0.0
        %1358 = vmatpush1.msra.mxu0 0.0
        %1359 = vmatprep.subr.mxu0 0.0
        %1360 = vmatpush1.msra.mxu0 0.0
        %1361 = vmatprep.subr.mxu0 0.0
        %1362 = vmatpush1.msra.mxu0 0.0
        %1363 = vmatprep.subr.mxu0 0.0
        %1364 = vmatpush1.msra.mxu0 %v1321
        %1365 = vmatprep.subr.mxu0 0.0
        %1366 = vmatpush1.msra.mxu0 %v1320
        %1367 = vmatprep.subr.mxu0 0.0
        %1368 = vmatpush1.msra.mxu0 %v1319
        %1369 = vmatprep.subr.mxu0 0.0
        %1370 = vmatpush1.msra.mxu0 %v1318
        %1371 = vmatprep.subr.mxu0 0.0
        %1372 = vmatpush1.msra.mxu0 %v1317
        %1373 = vmatprep.subr.mxu0 0.0
        %1374 = vmatpush1.msra.mxu0 %v1316
        %1375 = vmatprep.subr.mxu0 0.0
        %1376 = vmatpush1.msra.mxu0 %v1315
        %1377 = vmatprep.subr.mxu0 0.0
        %1378 = vmatpush1.msra.mxu0 %v1314
        %1379 = vmatprep.subr.mxu0 0.0
        %1380 = vmatpush2.msra.mxu0 0.0
        %1381 = vmatprep.subr.mxu0 0.0
        %1382 = vmatpush2.msra.mxu0 0.0
        %1383 = vmatprep.subr.mxu0 0.0
        %1384 = vmatpush2.msra.mxu0 0.0
        %1385 = vmatprep.subr.mxu0 0.0
        %1386 = vmatpush2.msra.mxu0 0.0
        %1387 = vmatprep.subr.mxu0 0.0
        %1388 = vmatpush2.msra.mxu0 0.0
        %1389 = vmatprep.subr.mxu0 0.0
        %1390 = vmatpush2.msra.mxu0 0.0
        %1391 = vmatprep.subr.mxu0 0.0
        %1392 = vmatpush2.msra.mxu0 0.0
        %1393 = vmatprep.subr.mxu0 0.0
        %1394 = vmatpush2.msra.mxu0 0.0
        %1395 = vmatprep.subr.mxu0 0.0
        %1396 = vmatpush2.msra.mxu0 0.0
        %1397 = vmatprep.subr.mxu0 0.0
        %1398 = vmatpush2.msra.mxu0 0.0
        %1399 = vmatprep.subr.mxu0 0.0
        %1400 = vmatpush2.msra.mxu0 0.0
        %1401 = vmatprep.subr.mxu0 0.0
        %1402 = vmatpush2.msra.mxu0 0.0
        %1403 = vmatprep.subr.mxu0 0.0
        %1404 = vmatpush2.msra.mxu0 0.0
        %1405 = vmatprep.subr.mxu0 0.0
        %1406 = vmatpush2.msra.mxu0 0.0
        %1407 = vmatprep.subr.mxu0 0.0
        %1408 = vmatpush2.msra.mxu0 0.0
        %1409 = vmatprep.subr.mxu0 0.0
        %1410 = vmatpush2.msra.mxu0 0.0
        %1411 = vmatprep.mubr.f32.mxu0 0.0
        %1412 = vmatmul.mubr.f32.gmra.mxu0 %v1324
        %v1413 = vpop.f32.mrf.mxu0
        %v1414 = vadd.f32 0.0, %v1413
        %v1415 = vpop.f32.mrf.mxu0
        %1416 = vmatprep.mubr.f32.mxu0 0.0
        %1417 = vmatmul.mubr.f32.gmra.mxu0 %v1327
        %v1418 = vpop.f32.mrf.mxu0
        %v1419 = vadd.f32 0.0, %v1418
        %v1420 = vpop.f32.mrf.mxu0
        %1421 = vmatprep.mubr.f32.mxu0 0.0
        %1422 = vmatmul.mubr.f32.gmra.mxu0 %v1330
        %v1423 = vpop.f32.mrf.mxu0
        %v1424 = vadd.f32 0.0, %v1423
        %v1425 = vpop.f32.mrf.mxu0
        %1426 = vmatprep.mubr.f32.mxu0 0.0
        %1427 = vmatmul.mubr.f32.gmra.mxu0 %v1333
        %v1428 = vpop.f32.mrf.mxu0
        %v1429 = vadd.f32 0.0, %v1428
        %v1430 = vpop.f32.mrf.mxu0
        %1431 = vmatprep.mubr.f32.mxu0 0.0
        %1432 = vmatmul.mubr.f32.gmra.mxu0 %v1336
        %v1433 = vpop.f32.mrf.mxu0
        %v1434 = vadd.f32 0.0, %v1433
        %v1435 = vpop.f32.mrf.mxu0
        %1436 = vmatprep.mubr.f32.mxu0 0.0
        %1437 = vmatmul.mubr.f32.gmra.mxu0 %v1339
        %v1438 = vpop.f32.mrf.mxu0
        %v1439 = vadd.f32 0.0, %v1438
        %v1440 = vpop.f32.mrf.mxu0
        %1441 = vmatprep.mubr.f32.mxu0 0.0
        %1442 = vmatmul.mubr.f32.gmra.mxu0 %v1342
        %v1443 = vpop.f32.mrf.mxu0
        %v1444 = vadd.f32 0.0, %v1443
        %v1445 = vpop.f32.mrf.mxu0
        %1446 = vmatprep.mubr.f32.mxu0 0.0
        %1447 = vmatmul.mubr.f32.gmra.mxu0 %v1345
        %v1448 = vpop.f32.mrf.mxu0
        %v1449 = vadd.f32 0.0, %v1448
        %v1450 = vpop.f32.mrf.mxu0
        %1451 = vdwg.mxu0
        %v1452 = vld [vmem:[%s12] sm:$0x3]
        %vm1453 = vcmask 15360
        %v1455 = vsel %vm1453, %v1414, 0
        %v1458 = vsel %vm1453, %v1419, 0
        %v1461 = vsel %vm1453, %v1424, 0
        %v1464 = vsel %vm1453, %v1429, 0
        %v1467 = vsel %vm1453, %v1434, 0
        %v1470 = vsel %vm1453, %v1439, 0
        %v1473 = vsel %vm1453, %v1444, 0
        %v1476 = vsel %vm1453, %v1449, 0
        %v1479 = vsel %vm834, %v1452, 0
        %1481 = vmatprep.subr.mxu0 0.0
        %1482 = vmatpush1.msra.mxu0 0.0
        %1483 = vmatprep.subr.mxu0 0.0
        %1484 = vmatpush1.msra.mxu0 0.0
        %1485 = vmatprep.subr.mxu0 0.0
        %1486 = vmatpush1.msra.mxu0 0.0
        %1487 = vmatprep.subr.mxu0 0.0
        %1488 = vmatpush1.msra.mxu0 0.0
        %1489 = vmatprep.subr.mxu0 0.0
        %1490 = vmatpush1.msra.mxu0 0.0
        %1491 = vmatprep.subr.mxu0 0.0
        %1492 = vmatpush1.msra.mxu0 0.0
        %1493 = vmatprep.subr.mxu0 0.0
        %1494 = vmatpush1.msra.mxu0 0.0
        %1495 = vmatprep.subr.mxu0 0.0
        %1496 = vmatpush1.msra.mxu0 0.0
        %1497 = vmatprep.subr.mxu0 0.0
        %1498 = vmatpush1.msra.mxu0 0.0
        %1499 = vmatprep.subr.mxu0 0.0
        %1500 = vmatpush1.msra.mxu0 0.0
        %1501 = vmatprep.subr.mxu0 0.0
        %1502 = vmatpush1.msra.mxu0 0.0
        %1503 = vmatprep.subr.mxu0 0.0
        %1504 = vmatpush1.msra.mxu0 0.0
        %1505 = vmatprep.subr.mxu0 0.0
        %1506 = vmatpush1.msra.mxu0 0.0
        %1507 = vmatprep.subr.mxu0 0.0
        %1508 = vmatpush1.msra.mxu0 0.0
        %1509 = vmatprep.subr.mxu0 0.0
        %1510 = vmatpush1.msra.mxu0 0.0
        %1511 = vmatprep.subr.mxu0 0.0
        %1512 = vmatpush1.msra.mxu0 %v1479
        %1513 = vmatprep.subr.mxu0 0.0
        %1514 = vmatpush2.msra.mxu0 0.0
        %1515 = vmatprep.subr.mxu0 0.0
        %1516 = vmatpush2.msra.mxu0 0.0
        %1517 = vmatprep.subr.mxu0 0.0
        %1518 = vmatpush2.msra.mxu0 0.0
        %1519 = vmatprep.subr.mxu0 0.0
        %1520 = vmatpush2.msra.mxu0 0.0
        %1521 = vmatprep.subr.mxu0 0.0
        %1522 = vmatpush2.msra.mxu0 0.0
        %1523 = vmatprep.subr.mxu0 0.0
        %1524 = vmatpush2.msra.mxu0 0.0
        %1525 = vmatprep.subr.mxu0 0.0
        %1526 = vmatpush2.msra.mxu0 0.0
        %1527 = vmatprep.subr.mxu0 0.0
        %1528 = vmatpush2.msra.mxu0 0.0
        %1529 = vmatprep.subr.mxu0 0.0
        %1530 = vmatpush2.msra.mxu0 0.0
        %1531 = vmatprep.subr.mxu0 0.0
        %1532 = vmatpush2.msra.mxu0 0.0
        %1533 = vmatprep.subr.mxu0 0.0
        %1534 = vmatpush2.msra.mxu0 0.0
        %1535 = vmatprep.subr.mxu0 0.0
        %1536 = vmatpush2.msra.mxu0 0.0
        %1537 = vmatprep.subr.mxu0 0.0
        %1538 = vmatpush2.msra.mxu0 0.0
        %1539 = vmatprep.subr.mxu0 0.0
        %1540 = vmatpush2.msra.mxu0 0.0
        %1541 = vmatprep.subr.mxu0 0.0
        %1542 = vmatpush2.msra.mxu0 0.0
        %1543 = vmatprep.subr.mxu0 0.0
        %1544 = vmatpush2.msra.mxu0 0.0
        %1545 = vmatprep.mubr.f32.mxu0 0.0
        %1546 = vmatmul.mubr.f32.gmra.mxu0 %v1455
        %v1547 = vpop.f32.mrf.mxu0
        %v1548 = vadd.f32 0.0, %v1547
        %v1549 = vpop.f32.mrf.mxu0
        %1550 = vmatprep.mubr.f32.mxu0 0.0
        %1551 = vmatmul.mubr.f32.gmra.mxu0 %v1458
        %v1552 = vpop.f32.mrf.mxu0
        %v1553 = vadd.f32 0.0, %v1552
        %v1554 = vpop.f32.mrf.mxu0
        %1555 = vmatprep.mubr.f32.mxu0 0.0
        %1556 = vmatmul.mubr.f32.gmra.mxu0 %v1461
        %v1557 = vpop.f32.mrf.mxu0
        %v1558 = vadd.f32 0.0, %v1557
        %v1559 = vpop.f32.mrf.mxu0
        %1560 = vmatprep.mubr.f32.mxu0 0.0
        %1561 = vmatmul.mubr.f32.gmra.mxu0 %v1464
        %v1562 = vpop.f32.mrf.mxu0
        %v1563 = vadd.f32 0.0, %v1562
        %v1564 = vpop.f32.mrf.mxu0
        %1565 = vmatprep.mubr.f32.mxu0 0.0
        %1566 = vmatmul.mubr.f32.gmra.mxu0 %v1467
        %v1567 = vpop.f32.mrf.mxu0
        %v1568 = vadd.f32 0.0, %v1567
        %v1569 = vpop.f32.mrf.mxu0
        %1570 = vmatprep.mubr.f32.mxu0 0.0
        %1571 = vmatmul.mubr.f32.gmra.mxu0 %v1470
        %v1572 = vpop.f32.mrf.mxu0
        %v1573 = vadd.f32 0.0, %v1572
        %v1574 = vpop.f32.mrf.mxu0
        %1575 = vmatprep.mubr.f32.mxu0 0.0
        %1576 = vmatmul.mubr.f32.gmra.mxu0 %v1473
        %v1577 = vpop.f32.mrf.mxu0
        %v1578 = vadd.f32 0.0, %v1577
        %v1579 = vpop.f32.mrf.mxu0
        %1580 = vmatprep.mubr.f32.mxu0 0.0
        %1581 = vmatmul.mubr.f32.gmra.mxu0 %v1476
        %v1582 = vpop.f32.mrf.mxu0
        %v1583 = vadd.f32 0.0, %v1582
        %v1584 = vpop.f32.mrf.mxu0
        %1585 = vdwg.mxu0
        %v1586 = vmul.f32 %v1548, %v1548
        %v1587 = vmul.f32 %v1553, %v1553
        %v1588 = vmul.f32 %v1558, %v1558
        %v1589 = vmul.f32 %v1563, %v1563
        %v1590 = vsub.f32 %v1568, %v1586
        %v1591 = vsub.f32 %v1573, %v1587
        %v1592 = vsub.f32 %v1578, %v1588
        %v1593 = vsub.f32 %v1583, %v1589
        %v1594 = vsub.f32 %v1306, %v1548
        %v1595 = vsub.f32 %v1307, %v1553
        %v1596 = vsub.f32 %v1308, %v1558
        %v1597 = vsub.f32 %v1309, %v1563
        %v1598 = vadd.f32 %v1590, 1e-05
        %v1599 = vadd.f32 %v1591, 1e-05
        %v1600 = vadd.f32 %v1592, 1e-05
        %v1601 = vadd.f32 %v1593, 1e-05
        %v1602 = vrsqrt.pop %v1598
        %v1603 = vrsqrt.pop %v1599
        %v1604 = vrsqrt.pop %v1600
        %v1605 = vrsqrt.pop %v1601
        %v1606 = vmul.f32 %v1594, %v1602
        %v1607 = vmul.f32 %v1595, %v1603
        %v1608 = vmul.f32 %v1596, %v1604
        %v1609 = vmul.f32 %v1597, %v1605
        %v1610 = vld [vmem:[%s9] sm:$0x1]
        %v1612 = vlaneseq
        %v1613 = vshrl.u32 %v1612, 7
        %v1614 = vsub.s32 0, %v1613
        %v1615 = vrot.slane %v1610, %v1614
        %v1617 = vmul.f32 %v1606, %v1615
        %v1618 = vmul.f32 %v1607, %v1615
        %v1619 = vmul.f32 %v1608, %v1615
        %v1620 = vmul.f32 %v1609, %v1615
        %v1621 = vld [vmem:[%s10] sm:$0x1]
        %v1623 = vlaneseq
        %v1624 = vshrl.u32 %v1623, 7
        %v1625 = vsub.s32 0, %v1624
        %v1626 = vrot.slane %v1621, %v1625
        %v1628 = vadd.f32 %v1617, %v1626
        %v1629 = vadd.f32 %v1618, %v1626
        %v1630 = vadd.f32 %v1619, %v1626
        %v1631 = vadd.f32 %v1620, %v1626
        %v1632 = vpack.c.bf16 %v1629, %v1628
        %v1633 = vpack.c.bf16 %v1631, %v1630
        %v1634 = vld [vmem:[%s13] sm:$0xf]
        %v1635 = vld [vmem:[%s13 + $0x4] sm:$0xf]
        %v1636 = vld [vmem:[%s13 + $0x8] sm:$0xf]
        %v1637 = vld [vmem:[%s13 + $0xc] sm:$0xf]
        %v1638 = vld [vmem:[%s13 + $0x10] sm:$0xf]
        %v1639 = vld [vmem:[%s13 + $0x14] sm:$0xf]
        %v1640 = vld [vmem:[%s13 + $0x18] sm:$0xf]
        %v1641 = vld [vmem:[%s13 + $0x1c] sm:$0xf]
        %v1642 = vld [vmem:[%s14] sm:$0x1]
        %v1644 = vlaneseq
        %v1645 = vshrl.u32 %v1644, 7
        %v1646 = vsub.s32 0, %v1645
        %v1647 = vrot.slane %v1642, %v1646
        %v1657 = vunpack.c.l.b16 %v1634
        %v1658 = vunpack.c.l.b16 %v1635
        %v1659 = vunpack.c.l.b16 %v1636
        %v1660 = vunpack.c.l.b16 %v1637
        %v1661 = vunpack.c.l.b16 %v1638
        %v1662 = vunpack.c.l.b16 %v1639
        %v1663 = vunpack.c.l.b16 %v1640
        %v1664 = vunpack.c.l.b16 %v1641
        %v1665 = vpack.c.b16 %v1658, %v1657
        %v1666 = vpack.c.b16 %v1660, %v1659
        %v1667 = vpack.c.b16 %v1662, %v1661
        %v1668 = vpack.c.b16 %v1664, %v1663
        %v1674 = vsel %vm1322, %v1632, 0
        %v1677 = vsel %vm1322, %v1633, 0
        %1679 = vmatprep.subr.bf16.mxu0 0
        %1680 = vmatpush1.bf16.msra.mxu0 0
        %1681 = vmatprep.subr.bf16.mxu0 0
        %1682 = vmatpush1.bf16.msra.mxu0 0
        %1683 = vmatprep.subr.bf16.mxu0 0
        %1684 = vmatpush1.bf16.msra.mxu0 0
        %1685 = vmatprep.subr.bf16.mxu0 0
        %1686 = vmatpush1.bf16.msra.mxu0 0
        %1687 = vmatprep.subr.bf16.mxu0 0
        %1688 = vmatpush1.bf16.msra.mxu0 %v1668
        %1689 = vmatprep.subr.bf16.mxu0 0
        %1690 = vmatpush1.bf16.msra.mxu0 %v1667
        %1691 = vmatprep.subr.bf16.mxu0 0
        %1692 = vmatpush1.bf16.msra.mxu0 %v1666
        %1693 = vmatprep.subr.bf16.mxu0 0
        %1694 = vmatpush1.bf16.msra.mxu0 %v1665
        %1695 = vmatprep.subr.bf16.mxu0 0
        %1696 = vmatpush2.bf16.msra.mxu0 0
        %1697 = vmatprep.subr.bf16.mxu0 0
        %1698 = vmatpush2.bf16.msra.mxu0 0
        %1699 = vmatprep.subr.bf16.mxu0 0
        %1700 = vmatpush2.bf16.msra.mxu0 0
        %1701 = vmatprep.subr.bf16.mxu0 0
        %1702 = vmatpush2.bf16.msra.mxu0 0
        %1703 = vmatprep.subr.bf16.mxu0 0
        %1704 = vmatpush2.bf16.msra.mxu0 0
        %1705 = vmatprep.subr.bf16.mxu0 0
        %1706 = vmatpush2.bf16.msra.mxu0 0
        %1707 = vmatprep.subr.bf16.mxu0 0
        %1708 = vmatpush2.bf16.msra.mxu0 0
        %1709 = vmatprep.subr.bf16.mxu0 0
        %1710 = vmatpush2.bf16.msra.mxu0 0
        %1711 = vmatprep.mubr.bf16.mxu0 0
        %1712 = vmatmul.mubr.bf16.gmra.mxu0 %v1674
        %v1713 = vpop.f32.mrf.mxu0
        %v1714 = vadd.f32 %v1647, %v1713
        %v1715 = vpop.f32.mrf.mxu0
        %v1716 = vpop.f32.mrf.mxu0
        %v1717 = vadd.f32 %v1647, %v1716
        %v1718 = vpop.f32.mrf.mxu0
        %1719 = vmatprep.mubr.bf16.mxu0 0
        %1720 = vmatmul.mubr.bf16.gmra.mxu0 %v1677
        %v1721 = vpop.f32.mrf.mxu0
        %v1722 = vadd.f32 %v1647, %v1721
        %v1723 = vpop.f32.mrf.mxu0
        %v1724 = vpop.f32.mrf.mxu0
        %v1725 = vadd.f32 %v1647, %v1724
        %v1726 = vpop.f32.mrf.mxu0
        %1727 = vdwg.mxu0
        %vm1728 = vcmp.ge.f32.partialorder %v1714, 0.0
        %vm1729 = vcmp.ge.f32.partialorder %v1717, 0.0
        %vm1730 = vcmp.ge.f32.partialorder %v1722, 0.0
        %vm1731 = vcmp.ge.f32.partialorder %v1725, 0.0
        %v1732 = vmul.f32 %v1714, 0.2
        %v1733 = vmul.f32 %v1717, 0.2
        %v1734 = vmul.f32 %v1722, 0.2
        %v1735 = vmul.f32 %v1725, 0.2
        %v1736 = vsel %vm1728, %v1714, %v1732
        %v1737 = vsel %vm1729, %v1717, %v1733
        %v1738 = vsel %vm1730, %v1722, %v1734
        %v1739 = vsel %vm1731, %v1725, %v1735
        %v1740 = vmul.f32 %v1736, %v1736
        %v1741 = vmul.f32 %v1737, %v1737
        %v1742 = vmul.f32 %v1738, %v1738
        %v1743 = vmul.f32 %v1739, %v1739
        %v1744 = vld [vmem:[%s17] sm:$0xff]
        %v1745 = vld [vmem:[%s17 + $0x8] sm:$0xff]
        %v1746 = vld [vmem:[%s17 + $0x10] sm:$0xff]
        %v1747 = vld [vmem:[%s17 + $0x18] sm:$0xff]
        %v1748 = vld [vmem:[%s17 + $0x20] sm:$0xff]
        %v1749 = vld [vmem:[%s17 + $0x28] sm:$0xff]
        %v1750 = vld [vmem:[%s17 + $0x30] sm:$0xff]
        %v1751 = vld [vmem:[%s17 + $0x38] sm:$0xff]
        %v1752 = vld [vmem:[%s17 + $0x40] sm:$0xff]
        %v1753 = vld [vmem:[%s17 + $0x48] sm:$0xff]
        %v1754 = vld [vmem:[%s17 + $0x50] sm:$0xff]
        %v1755 = vld [vmem:[%s17 + $0x58] sm:$0xff]
        %v1756 = vld [vmem:[%s17 + $0x60] sm:$0xff]
        %v1757 = vld [vmem:[%s17 + $0x68] sm:$0xff]
        %v1758 = vld [vmem:[%s17 + $0x70] sm:$0xff]
        %v1759 = vld [vmem:[%s17 + $0x78] sm:$0xff]
        %1760 = vmatprep.subr.mxu0 0.0
        %1761 = vmatpush1.msra.mxu0 %v1759
        %1762 = vmatprep.subr.mxu0 0.0
        %1763 = vmatpush1.msra.mxu0 %v1758
        %1764 = vmatprep.subr.mxu0 0.0
        %1765 = vmatpush1.msra.mxu0 %v1757
        %1766 = vmatprep.subr.mxu0 0.0
        %1767 = vmatpush1.msra.mxu0 %v1756
        %1768 = vmatprep.subr.mxu0 0.0
        %1769 = vmatpush1.msra.mxu0 %v1755
        %1770 = vmatprep.subr.mxu0 0.0
        %1771 = vmatpush1.msra.mxu0 %v1754
        %1772 = vmatprep.subr.mxu0 0.0
        %1773 = vmatpush1.msra.mxu0 %v1753
        %1774 = vmatprep.subr.mxu0 0.0
        %1775 = vmatpush1.msra.mxu0 %v1752
        %1776 = vmatprep.subr.mxu0 0.0
        %1777 = vmatpush1.msra.mxu0 %v1751
        %1778 = vmatprep.subr.mxu0 0.0
        %1779 = vmatpush1.msra.mxu0 %v1750
        %1780 = vmatprep.subr.mxu0 0.0
        %1781 = vmatpush1.msra.mxu0 %v1749
        %1782 = vmatprep.subr.mxu0 0.0
        %1783 = vmatpush1.msra.mxu0 %v1748
        %1784 = vmatprep.subr.mxu0 0.0
        %1785 = vmatpush1.msra.mxu0 %v1747
        %1786 = vmatprep.subr.mxu0 0.0
        %1787 = vmatpush1.msra.mxu0 %v1746
        %1788 = vmatprep.subr.mxu0 0.0
        %1789 = vmatpush1.msra.mxu0 %v1745
        %1790 = vmatprep.subr.mxu0 0.0
        %1791 = vmatpush1.msra.mxu0 %v1744
        %1792 = vmatprep.subr.mxu0 0.0
        %1793 = vmatpush2.msra.mxu0 0.0
        %1794 = vmatprep.subr.mxu0 0.0
        %1795 = vmatpush2.msra.mxu0 0.0
        %1796 = vmatprep.subr.mxu0 0.0
        %1797 = vmatpush2.msra.mxu0 0.0
        %1798 = vmatprep.subr.mxu0 0.0
        %1799 = vmatpush2.msra.mxu0 0.0
        %1800 = vmatprep.subr.mxu0 0.0
        %1801 = vmatpush2.msra.mxu0 0.0
        %1802 = vmatprep.subr.mxu0 0.0
        %1803 = vmatpush2.msra.mxu0 0.0
        %1804 = vmatprep.subr.mxu0 0.0
        %1805 = vmatpush2.msra.mxu0 0.0
        %1806 = vmatprep.subr.mxu0 0.0
        %1807 = vmatpush2.msra.mxu0 0.0
        %1808 = vmatprep.subr.mxu0 0.0
        %1809 = vmatpush2.msra.mxu0 0.0
        %1810 = vmatprep.subr.mxu0 0.0
        %1811 = vmatpush2.msra.mxu0 0.0
        %1812 = vmatprep.subr.mxu0 0.0
        %1813 = vmatpush2.msra.mxu0 0.0
        %1814 = vmatprep.subr.mxu0 0.0
        %1815 = vmatpush2.msra.mxu0 0.0
        %1816 = vmatprep.subr.mxu0 0.0
        %1817 = vmatpush2.msra.mxu0 0.0
        %1818 = vmatprep.subr.mxu0 0.0
        %1819 = vmatpush2.msra.mxu0 0.0
        %1820 = vmatprep.subr.mxu0 0.0
        %1821 = vmatpush2.msra.mxu0 0.0
        %1822 = vmatprep.subr.mxu0 0.0
        %1823 = vmatpush2.msra.mxu0 0.0
        %1824 = vmatprep.mubr.f32.mxu0 0.0
        %1825 = vmatmul.mubr.f32.gmra.mxu0 %v1736
        %v1826 = vpop.f32.mrf.mxu0
        %v1827 = vadd.f32 0.0, %v1826
        %v1828 = vpop.f32.mrf.mxu0
        %1829 = vmatprep.mubr.f32.mxu0 0.0
        %1830 = vmatmul.mubr.f32.gmra.mxu0 %v1737
        %v1831 = vpop.f32.mrf.mxu0
        %v1832 = vadd.f32 0.0, %v1831
        %v1833 = vpop.f32.mrf.mxu0
        %1834 = vmatprep.mubr.f32.mxu0 0.0
        %1835 = vmatmul.mubr.f32.gmra.mxu0 %v1738
        %v1836 = vpop.f32.mrf.mxu0
        %v1837 = vadd.f32 0.0, %v1836
        %v1838 = vpop.f32.mrf.mxu0
        %1839 = vmatprep.mubr.f32.mxu0 0.0
        %1840 = vmatmul.mubr.f32.gmra.mxu0 %v1739
        %v1841 = vpop.f32.mrf.mxu0
        %v1842 = vadd.f32 0.0, %v1841
        %v1843 = vpop.f32.mrf.mxu0
        %1844 = vmatprep.mubr.f32.mxu0 0.0
        %1845 = vmatmul.mubr.f32.gmra.mxu0 %v1740
        %v1846 = vpop.f32.mrf.mxu0
        %v1847 = vadd.f32 0.0, %v1846
        %v1848 = vpop.f32.mrf.mxu0
        %1849 = vmatprep.mubr.f32.mxu0 0.0
        %1850 = vmatmul.mubr.f32.gmra.mxu0 %v1741
        %v1851 = vpop.f32.mrf.mxu0
        %v1852 = vadd.f32 0.0, %v1851
        %v1853 = vpop.f32.mrf.mxu0
        %1854 = vmatprep.mubr.f32.mxu0 0.0
        %1855 = vmatmul.mubr.f32.gmra.mxu0 %v1742
        %v1856 = vpop.f32.mrf.mxu0
        %v1857 = vadd.f32 0.0, %v1856
        %v1858 = vpop.f32.mrf.mxu0
        %1859 = vmatprep.mubr.f32.mxu0 0.0
        %1860 = vmatmul.mubr.f32.gmra.mxu0 %v1743
        %v1861 = vpop.f32.mrf.mxu0
        %v1862 = vadd.f32 0.0, %v1861
        %v1863 = vpop.f32.mrf.mxu0
        %1864 = vdwg.mxu0
        %v1865 = vld [vmem:[%s18] sm:$0xf]
        %v1867 = vsel %vm827, %v1827, 0
        %v1870 = vsel %vm827, %v1832, 0
        %v1873 = vsel %vm827, %v1837, 0
        %v1876 = vsel %vm827, %v1842, 0
        %v1879 = vsel %vm827, %v1847, 0
        %v1882 = vsel %vm827, %v1852, 0
        %v1885 = vsel %vm827, %v1857, 0
        %v1888 = vsel %vm827, %v1862, 0
        %vm1890 = vcmask 1043456
        %v1892 = vsel %vm1890, %v1865, 0
        %1894 = vmatprep.subr.mxu0 0.0
        %1895 = vmatpush1.msra.mxu0 0.0
        %1896 = vmatprep.subr.mxu0 0.0
        %1897 = vmatpush1.msra.mxu0 0.0
        %1898 = vmatprep.subr.mxu0 0.0
        %1899 = vmatpush1.msra.mxu0 0.0
        %1900 = vmatprep.subr.mxu0 0.0
        %1901 = vmatpush1.msra.mxu0 0.0
        %1902 = vmatprep.subr.mxu0 0.0
        %1903 = vmatpush1.msra.mxu0 0.0
        %1904 = vmatprep.subr.mxu0 0.0
        %1905 = vmatpush1.msra.mxu0 0.0
        %1906 = vmatprep.subr.mxu0 0.0
        %1907 = vmatpush1.msra.mxu0 0.0
        %1908 = vmatprep.subr.mxu0 0.0
        %1909 = vmatpush1.msra.mxu0 0.0
        %1910 = vmatprep.subr.mxu0 0.0
        %1911 = vmatpush1.msra.mxu0 0.0
        %1912 = vmatprep.subr.mxu0 0.0
        %1913 = vmatpush1.msra.mxu0 0.0
        %1914 = vmatprep.subr.mxu0 0.0
        %1915 = vmatpush1.msra.mxu0 0.0
        %1916 = vmatprep.subr.mxu0 0.0
        %1917 = vmatpush1.msra.mxu0 0.0
        %1918 = vmatprep.subr.mxu0 0.0
        %1919 = vmatpush1.msra.mxu0 0.0
        %1920 = vmatprep.subr.mxu0 0.0
        %1921 = vmatpush1.msra.mxu0 0.0
        %1922 = vmatprep.subr.mxu0 0.0
        %1923 = vmatpush1.msra.mxu0 0.0
        %1924 = vmatprep.subr.mxu0 0.0
        %1925 = vmatpush1.msra.mxu0 %v1892
        %1926 = vmatprep.subr.mxu0 0.0
        %1927 = vmatpush2.msra.mxu0 0.0
        %1928 = vmatprep.subr.mxu0 0.0
        %1929 = vmatpush2.msra.mxu0 0.0
        %1930 = vmatprep.subr.mxu0 0.0
        %1931 = vmatpush2.msra.mxu0 0.0
        %1932 = vmatprep.subr.mxu0 0.0
        %1933 = vmatpush2.msra.mxu0 0.0
        %1934 = vmatprep.subr.mxu0 0.0
        %1935 = vmatpush2.msra.mxu0 0.0
        %1936 = vmatprep.subr.mxu0 0.0
        %1937 = vmatpush2.msra.mxu0 0.0
        %1938 = vmatprep.subr.mxu0 0.0
        %1939 = vmatpush2.msra.mxu0 0.0
        %1940 = vmatprep.subr.mxu0 0.0
        %1941 = vmatpush2.msra.mxu0 0.0
        %1942 = vmatprep.subr.mxu0 0.0
        %1943 = vmatpush2.msra.mxu0 0.0
        %1944 = vmatprep.subr.mxu0 0.0
        %1945 = vmatpush2.msra.mxu0 0.0
        %1946 = vmatprep.subr.mxu0 0.0
        %1947 = vmatpush2.msra.mxu0 0.0
        %1948 = vmatprep.subr.mxu0 0.0
        %1949 = vmatpush2.msra.mxu0 0.0
        %1950 = vmatprep.subr.mxu0 0.0
        %1951 = vmatpush2.msra.mxu0 0.0
        %1952 = vmatprep.subr.mxu0 0.0
        %1953 = vmatpush2.msra.mxu0 0.0
        %1954 = vmatprep.subr.mxu0 0.0
        %1955 = vmatpush2.msra.mxu0 0.0
        %1956 = vmatprep.subr.mxu0 0.0
        %1957 = vmatpush2.msra.mxu0 0.0
        %1958 = vmatprep.mubr.f32.mxu0 0.0
        %1959 = vmatmul.mubr.f32.gmra.mxu0 %v1867
        %v1960 = vpop.f32.mrf.mxu0
        %v1961 = vadd.f32 0.0, %v1960
        %v1962 = vpop.f32.mrf.mxu0
        %1963 = vmatprep.mubr.f32.mxu0 0.0
        %1964 = vmatmul.mubr.f32.gmra.mxu0 %v1870
        %v1965 = vpop.f32.mrf.mxu0
        %v1966 = vadd.f32 0.0, %v1965
        %v1967 = vpop.f32.mrf.mxu0
        %1968 = vmatprep.mubr.f32.mxu0 0.0
        %1969 = vmatmul.mubr.f32.gmra.mxu0 %v1873
        %v1970 = vpop.f32.mrf.mxu0
        %v1971 = vadd.f32 0.0, %v1970
        %v1972 = vpop.f32.mrf.mxu0
        %1973 = vmatprep.mubr.f32.mxu0 0.0
        %1974 = vmatmul.mubr.f32.gmra.mxu0 %v1876
        %v1975 = vpop.f32.mrf.mxu0
        %v1976 = vadd.f32 0.0, %v1975
        %v1977 = vpop.f32.mrf.mxu0
        %1978 = vmatprep.mubr.f32.mxu0 0.0
        %1979 = vmatmul.mubr.f32.gmra.mxu0 %v1879
        %v1980 = vpop.f32.mrf.mxu0
        %v1981 = vadd.f32 0.0, %v1980
        %v1982 = vpop.f32.mrf.mxu0
        %1983 = vmatprep.mubr.f32.mxu0 0.0
        %1984 = vmatmul.mubr.f32.gmra.mxu0 %v1882
        %v1985 = vpop.f32.mrf.mxu0
        %v1986 = vadd.f32 0.0, %v1985
        %v1987 = vpop.f32.mrf.mxu0
        %1988 = vmatprep.mubr.f32.mxu0 0.0
        %1989 = vmatmul.mubr.f32.gmra.mxu0 %v1885
        %v1990 = vpop.f32.mrf.mxu0
        %v1991 = vadd.f32 0.0, %v1990
        %v1992 = vpop.f32.mrf.mxu0
        %1993 = vmatprep.mubr.f32.mxu0 0.0
        %1994 = vmatmul.mubr.f32.gmra.mxu0 %v1888
        %v1995 = vpop.f32.mrf.mxu0
        %v1996 = vadd.f32 0.0, %v1995
        %v1997 = vpop.f32.mrf.mxu0
        %1998 = vdwg.mxu0
        %v1999 = vmul.f32 %v1961, %v1961
        %v2000 = vmul.f32 %v1966, %v1966
        %v2001 = vmul.f32 %v1971, %v1971
        %v2002 = vmul.f32 %v1976, %v1976
        %v2003 = vsub.f32 %v1981, %v1999
        %v2004 = vsub.f32 %v1986, %v2000
        %v2005 = vsub.f32 %v1991, %v2001
        %v2006 = vsub.f32 %v1996, %v2002
        %v2007 = vsub.f32 %v1736, %v1961
        %v2008 = vsub.f32 %v1737, %v1966
        %v2009 = vsub.f32 %v1738, %v1971
        %v2010 = vsub.f32 %v1739, %v1976
        %v2011 = vadd.f32 %v2003, 1e-05
        %v2012 = vadd.f32 %v2004, 1e-05
        %v2013 = vadd.f32 %v2005, 1e-05
        %v2014 = vadd.f32 %v2006, 1e-05
        %v2015 = vrsqrt.pop %v2011
        %v2016 = vrsqrt.pop %v2012
        %v2017 = vrsqrt.pop %v2013
        %v2018 = vrsqrt.pop %v2014
        %v2019 = vmul.f32 %v2007, %v2015
        %v2020 = vmul.f32 %v2008, %v2016
        %v2021 = vmul.f32 %v2009, %v2017
        %v2022 = vmul.f32 %v2010, %v2018
        %v2023 = vld [vmem:[%s15] sm:$0x1]
        %v2025 = vlaneseq
        %v2026 = vshrl.u32 %v2025, 7
        %v2027 = vsub.s32 0, %v2026
        %v2028 = vrot.slane %v2023, %v2027
        %v2030 = vmul.f32 %v2019, %v2028
        %v2031 = vmul.f32 %v2020, %v2028
        %v2032 = vmul.f32 %v2021, %v2028
        %v2033 = vmul.f32 %v2022, %v2028
        %v2034 = vld [vmem:[%s16] sm:$0x1]
        %v2036 = vlaneseq
        %v2037 = vshrl.u32 %v2036, 7
        %v2038 = vsub.s32 0, %v2037
        %v2039 = vrot.slane %v2034, %v2038
        %v2041 = vadd.f32 %v2030, %v2039
        %v2042 = vadd.f32 %v2031, %v2039
        %v2043 = vadd.f32 %v2032, %v2039
        %v2044 = vadd.f32 %v2033, %v2039
        %v2045 = vpack.c.bf16 %v2042, %v2041
        %v2046 = vpack.c.bf16 %v2044, %v2043
        %v2049 = vunpack.c.l.b16 %v2045
        %v2050 = vunpack.c.h.b16 %v2045
        %v2051 = vunpack.c.l.b16 %v2046
        %v2052 = vunpack.c.h.b16 %v2046
        %v2053 = vpack.c.b16 %v2049, %v2049
        %v2054 = vpack.c.b16 %v2050, %v2050
        %v2055 = vpack.c.b16 %v2051, %v2051
        %v2056 = vpack.c.b16 %v2052, %v2052
        %2061 = vst [vmem:[%s789] sm:$0xf] %v2053
        %2062 = vst [vmem:[%s789 + $0x4] sm:$0xf] %v2054
        %2063 = vst [vmem:[%s789 + $0x8] sm:$0xf] %v2055
        %2064 = vst [vmem:[%s789 + $0xc] sm:$0xf] %v2056
        %v2065 = vld [vmem:[%s19] sm:$0xf]
        %v2066 = vld [vmem:[%s19 + $0x4] sm:$0xf]
        %v2067 = vld [vmem:[%s19 + $0x8] sm:$0xf]
        %v2068 = vld [vmem:[%s19 + $0xc] sm:$0xf]
        %v2069 = vld [vmem:[%s19 + $0x10] sm:$0xf]
        %v2070 = vld [vmem:[%s19 + $0x14] sm:$0xf]
        %v2071 = vld [vmem:[%s19 + $0x18] sm:$0xf]
        %v2072 = vld [vmem:[%s19 + $0x1c] sm:$0xf]
        %v2073 = vld [vmem:[%s19 + $0x20] sm:$0xf]
        %v2074 = vld [vmem:[%s19 + $0x24] sm:$0xf]
        %v2075 = vld [vmem:[%s19 + $0x28] sm:$0xf]
        %v2076 = vld [vmem:[%s19 + $0x2c] sm:$0xf]
        %v2077 = vld [vmem:[%s19 + $0x30] sm:$0xf]
        %v2078 = vld [vmem:[%s19 + $0x34] sm:$0xf]
        %v2079 = vld [vmem:[%s19 + $0x38] sm:$0xf]
        %v2080 = vld [vmem:[%s19 + $0x3c] sm:$0xf]
        %v2081 = vld [vmem:[%s20] sm:$0x1]
        %v2083 = vlaneseq
        %v2084 = vshrl.u32 %v2083, 7
        %v2085 = vsub.s32 0, %v2084
        %v2086 = vrot.slane %v2081, %v2085
        %v2104 = vunpack.c.l.b16 %v2065
        %v2105 = vunpack.c.l.b16 %v2066
        %v2106 = vunpack.c.l.b16 %v2067
        %v2107 = vunpack.c.l.b16 %v2068
        %v2108 = vunpack.c.l.b16 %v2069
        %v2109 = vunpack.c.l.b16 %v2070
        %v2110 = vunpack.c.l.b16 %v2071
        %v2111 = vunpack.c.l.b16 %v2072
        %v2112 = vunpack.c.l.b16 %v2073
        %v2113 = vunpack.c.l.b16 %v2074
        %v2114 = vunpack.c.l.b16 %v2075
        %v2115 = vunpack.c.l.b16 %v2076
        %v2116 = vunpack.c.l.b16 %v2077
        %v2117 = vunpack.c.l.b16 %v2078
        %v2118 = vunpack.c.l.b16 %v2079
        %v2119 = vunpack.c.l.b16 %v2080
        %v2120 = vpack.c.b16 %v2105, %v2104
        %v2121 = vpack.c.b16 %v2107, %v2106
        %v2122 = vpack.c.b16 %v2109, %v2108
        %v2123 = vpack.c.b16 %v2111, %v2110
        %v2124 = vpack.c.b16 %v2113, %v2112
        %v2125 = vpack.c.b16 %v2115, %v2114
        %v2126 = vpack.c.b16 %v2117, %v2116
        %v2127 = vpack.c.b16 %v2119, %v2118
        %2136 = vmatprep.subr.bf16.mxu0 0
        %2137 = vmatpush1.bf16.msra.mxu0 %v2127
        %2138 = vmatprep.subr.bf16.mxu0 0
        %2139 = vmatpush1.bf16.msra.mxu0 %v2126
        %2140 = vmatprep.subr.bf16.mxu0 0
        %2141 = vmatpush1.bf16.msra.mxu0 %v2125
        %2142 = vmatprep.subr.bf16.mxu0 0
        %2143 = vmatpush1.bf16.msra.mxu0 %v2124
        %2144 = vmatprep.subr.bf16.mxu0 0
        %2145 = vmatpush1.bf16.msra.mxu0 %v2123
        %2146 = vmatprep.subr.bf16.mxu0 0
        %2147 = vmatpush1.bf16.msra.mxu0 %v2122
        %2148 = vmatprep.subr.bf16.mxu0 0
        %2149 = vmatpush1.bf16.msra.mxu0 %v2121
        %2150 = vmatprep.subr.bf16.mxu0 0
        %2151 = vmatpush1.bf16.msra.mxu0 %v2120
        %2152 = vmatprep.subr.bf16.mxu0 0
        %2153 = vmatpush2.bf16.msra.mxu0 0
        %2154 = vmatprep.subr.bf16.mxu0 0
        %2155 = vmatpush2.bf16.msra.mxu0 0
        %2156 = vmatprep.subr.bf16.mxu0 0
        %2157 = vmatpush2.bf16.msra.mxu0 0
        %2158 = vmatprep.subr.bf16.mxu0 0
        %2159 = vmatpush2.bf16.msra.mxu0 0
        %2160 = vmatprep.subr.bf16.mxu0 0
        %2161 = vmatpush2.bf16.msra.mxu0 0
        %2162 = vmatprep.subr.bf16.mxu0 0
        %2163 = vmatpush2.bf16.msra.mxu0 0
        %2164 = vmatprep.subr.bf16.mxu0 0
        %2165 = vmatpush2.bf16.msra.mxu0 0
        %2166 = vmatprep.subr.bf16.mxu0 0
        %2167 = vmatpush2.bf16.msra.mxu0 0
        %2168 = vmatprep.mubr.bf16.mxu0 0
        %2169 = vmatmul.mubr.bf16.gmra.mxu0 %v2045
        %v2170 = vpop.f32.mrf.mxu0
        %v2171 = vadd.f32 %v2086, %v2170
        %v2172 = vpop.f32.mrf.mxu0
        %v2173 = vpop.f32.mrf.mxu0
        %v2174 = vadd.f32 %v2086, %v2173
        %v2175 = vpop.f32.mrf.mxu0
        %2176 = vmatprep.mubr.bf16.mxu0 0
        %2177 = vmatmul.mubr.bf16.gmra.mxu0 %v2046
        %v2178 = vpop.f32.mrf.mxu0
        %v2179 = vadd.f32 %v2086, %v2178
        %v2180 = vpop.f32.mrf.mxu0
        %v2181 = vpop.f32.mrf.mxu0
        %v2182 = vadd.f32 %v2086, %v2181
        %v2183 = vpop.f32.mrf.mxu0
        %2184 = vdwg.mxu0
        %vm2185 = vcmp.ge.f32.partialorder %v2171, 0.0
        %vm2186 = vcmp.ge.f32.partialorder %v2174, 0.0
        %vm2187 = vcmp.ge.f32.partialorder %v2179, 0.0
        %vm2188 = vcmp.ge.f32.partialorder %v2182, 0.0
        %v2189 = vmul.f32 %v2171, 0.2
        %v2190 = vmul.f32 %v2174, 0.2
        %v2191 = vmul.f32 %v2179, 0.2
        %v2192 = vmul.f32 %v2182, 0.2
        %v2193 = vsel %vm2185, %v2171, %v2189
        %v2194 = vsel %vm2186, %v2174, %v2190
        %v2195 = vsel %vm2187, %v2179, %v2191
        %v2196 = vsel %vm2188, %v2182, %v2192
        %v2197 = vmul.f32 %v2193, %v2193
        %v2198 = vmul.f32 %v2194, %v2194
        %v2199 = vmul.f32 %v2195, %v2195
        %v2200 = vmul.f32 %v2196, %v2196
        %v2201 = vld [vmem:[%s23] sm:$0xff]
        %v2202 = vld [vmem:[%s23 + $0x8] sm:$0xff]
        %v2203 = vld [vmem:[%s23 + $0x10] sm:$0xff]
        %v2204 = vld [vmem:[%s23 + $0x18] sm:$0xff]
        %v2205 = vld [vmem:[%s23 + $0x20] sm:$0xff]
        %v2206 = vld [vmem:[%s23 + $0x28] sm:$0xff]
        %v2207 = vld [vmem:[%s23 + $0x30] sm:$0xff]
        %v2208 = vld [vmem:[%s23 + $0x38] sm:$0xff]
        %v2209 = vld [vmem:[%s23 + $0x40] sm:$0xff]
        %v2210 = vld [vmem:[%s23 + $0x48] sm:$0xff]
        %v2211 = vld [vmem:[%s23 + $0x50] sm:$0xff]
        %v2212 = vld [vmem:[%s23 + $0x58] sm:$0xff]
        %v2213 = vld [vmem:[%s23 + $0x60] sm:$0xff]
        %v2214 = vld [vmem:[%s23 + $0x68] sm:$0xff]
        %v2215 = vld [vmem:[%s23 + $0x70] sm:$0xff]
        %v2216 = vld [vmem:[%s23 + $0x78] sm:$0xff]
        %2217 = vmatprep.subr.mxu0 0.0
        %2218 = vmatpush1.msra.mxu0 %v2216
        %2219 = vmatprep.subr.mxu0 0.0
        %2220 = vmatpush1.msra.mxu0 %v2215
        %2221 = vmatprep.subr.mxu0 0.0
        %2222 = vmatpush1.msra.mxu0 %v2214
        %2223 = vmatprep.subr.mxu0 0.0
        %2224 = vmatpush1.msra.mxu0 %v2213
        %2225 = vmatprep.subr.mxu0 0.0
        %2226 = vmatpush1.msra.mxu0 %v2212
        %2227 = vmatprep.subr.mxu0 0.0
        %2228 = vmatpush1.msra.mxu0 %v2211
        %2229 = vmatprep.subr.mxu0 0.0
        %2230 = vmatpush1.msra.mxu0 %v2210
        %2231 = vmatprep.subr.mxu0 0.0
        %2232 = vmatpush1.msra.mxu0 %v2209
        %2233 = vmatprep.subr.mxu0 0.0
        %2234 = vmatpush1.msra.mxu0 %v2208
        %2235 = vmatprep.subr.mxu0 0.0
        %2236 = vmatpush1.msra.mxu0 %v2207
        %2237 = vmatprep.subr.mxu0 0.0
        %2238 = vmatpush1.msra.mxu0 %v2206
        %2239 = vmatprep.subr.mxu0 0.0
        %2240 = vmatpush1.msra.mxu0 %v2205
        %2241 = vmatprep.subr.mxu0 0.0
        %2242 = vmatpush1.msra.mxu0 %v2204
        %2243 = vmatprep.subr.mxu0 0.0
        %2244 = vmatpush1.msra.mxu0 %v2203
        %2245 = vmatprep.subr.mxu0 0.0
        %2246 = vmatpush1.msra.mxu0 %v2202
        %2247 = vmatprep.subr.mxu0 0.0
        %2248 = vmatpush1.msra.mxu0 %v2201
        %2249 = vmatprep.subr.mxu0 0.0
        %2250 = vmatpush2.msra.mxu0 0.0
        %2251 = vmatprep.subr.mxu0 0.0
        %2252 = vmatpush2.msra.mxu0 0.0
        %2253 = vmatprep.subr.mxu0 0.0
        %2254 = vmatpush2.msra.mxu0 0.0
        %2255 = vmatprep.subr.mxu0 0.0
        %2256 = vmatpush2.msra.mxu0 0.0
        %2257 = vmatprep.subr.mxu0 0.0
        %2258 = vmatpush2.msra.mxu0 0.0
        %2259 = vmatprep.subr.mxu0 0.0
        %2260 = vmatpush2.msra.mxu0 0.0
        %2261 = vmatprep.subr.mxu0 0.0
        %2262 = vmatpush2.msra.mxu0 0.0
        %2263 = vmatprep.subr.mxu0 0.0
        %2264 = vmatpush2.msra.mxu0 0.0
        %2265 = vmatprep.subr.mxu0 0.0
        %2266 = vmatpush2.msra.mxu0 0.0
        %2267 = vmatprep.subr.mxu0 0.0
        %2268 = vmatpush2.msra.mxu0 0.0
        %2269 = vmatprep.subr.mxu0 0.0
        %2270 = vmatpush2.msra.mxu0 0.0
        %2271 = vmatprep.subr.mxu0 0.0
        %2272 = vmatpush2.msra.mxu0 0.0
        %2273 = vmatprep.subr.mxu0 0.0
        %2274 = vmatpush2.msra.mxu0 0.0
        %2275 = vmatprep.subr.mxu0 0.0
        %2276 = vmatpush2.msra.mxu0 0.0
        %2277 = vmatprep.subr.mxu0 0.0
        %2278 = vmatpush2.msra.mxu0 0.0
        %2279 = vmatprep.subr.mxu0 0.0
        %2280 = vmatpush2.msra.mxu0 0.0
        %2281 = vmatprep.mubr.f32.mxu0 0.0
        %2282 = vmatmul.mubr.f32.gmra.mxu0 %v2193
        %v2283 = vpop.f32.mrf.mxu0
        %v2284 = vadd.f32 0.0, %v2283
        %v2285 = vpop.f32.mrf.mxu0
        %2286 = vmatprep.mubr.f32.mxu0 0.0
        %2287 = vmatmul.mubr.f32.gmra.mxu0 %v2194
        %v2288 = vpop.f32.mrf.mxu0
        %v2289 = vadd.f32 0.0, %v2288
        %v2290 = vpop.f32.mrf.mxu0
        %2291 = vmatprep.mubr.f32.mxu0 0.0
        %2292 = vmatmul.mubr.f32.gmra.mxu0 %v2195
        %v2293 = vpop.f32.mrf.mxu0
        %v2294 = vadd.f32 0.0, %v2293
        %v2295 = vpop.f32.mrf.mxu0
        %2296 = vmatprep.mubr.f32.mxu0 0.0
        %2297 = vmatmul.mubr.f32.gmra.mxu0 %v2196
        %v2298 = vpop.f32.mrf.mxu0
        %v2299 = vadd.f32 0.0, %v2298
        %v2300 = vpop.f32.mrf.mxu0
        %2301 = vmatprep.mubr.f32.mxu0 0.0
        %2302 = vmatmul.mubr.f32.gmra.mxu0 %v2197
        %v2303 = vpop.f32.mrf.mxu0
        %v2304 = vadd.f32 0.0, %v2303
        %v2305 = vpop.f32.mrf.mxu0
        %2306 = vmatprep.mubr.f32.mxu0 0.0
        %2307 = vmatmul.mubr.f32.gmra.mxu0 %v2198
        %v2308 = vpop.f32.mrf.mxu0
        %v2309 = vadd.f32 0.0, %v2308
        %v2310 = vpop.f32.mrf.mxu0
        %2311 = vmatprep.mubr.f32.mxu0 0.0
        %2312 = vmatmul.mubr.f32.gmra.mxu0 %v2199
        %v2313 = vpop.f32.mrf.mxu0
        %v2314 = vadd.f32 0.0, %v2313
        %v2315 = vpop.f32.mrf.mxu0
        %2316 = vmatprep.mubr.f32.mxu0 0.0
        %2317 = vmatmul.mubr.f32.gmra.mxu0 %v2200
        %v2318 = vpop.f32.mrf.mxu0
        %v2319 = vadd.f32 0.0, %v2318
        %v2320 = vpop.f32.mrf.mxu0
        %2321 = vdwg.mxu0
        %v2322 = vld [vmem:[%s24] sm:$0xf]
        %v2324 = vsel %vm827, %v2284, 0
        %v2327 = vsel %vm827, %v2289, 0
        %v2330 = vsel %vm827, %v2294, 0
        %v2333 = vsel %vm827, %v2299, 0
        %v2336 = vsel %vm827, %v2304, 0
        %v2339 = vsel %vm827, %v2309, 0
        %v2342 = vsel %vm827, %v2314, 0
        %v2345 = vsel %vm827, %v2319, 0
        %v2348 = vsel %vm1890, %v2322, 0
        %2350 = vmatprep.subr.mxu0 0.0
        %2351 = vmatpush1.msra.mxu0 0.0
        %2352 = vmatprep.subr.mxu0 0.0
        %2353 = vmatpush1.msra.mxu0 0.0
        %2354 = vmatprep.subr.mxu0 0.0
        %2355 = vmatpush1.msra.mxu0 0.0
        %2356 = vmatprep.subr.mxu0 0.0
        %2357 = vmatpush1.msra.mxu0 0.0
        %2358 = vmatprep.subr.mxu0 0.0
        %2359 = vmatpush1.msra.mxu0 0.0
        %2360 = vmatprep.subr.mxu0 0.0
        %2361 = vmatpush1.msra.mxu0 0.0
        %2362 = vmatprep.subr.mxu0 0.0
        %2363 = vmatpush1.msra.mxu0 0.0
        %2364 = vmatprep.subr.mxu0 0.0
        %2365 = vmatpush1.msra.mxu0 0.0
        %2366 = vmatprep.subr.mxu0 0.0
        %2367 = vmatpush1.msra.mxu0 0.0
        %2368 = vmatprep.subr.mxu0 0.0
        %2369 = vmatpush1.msra.mxu0 0.0
        %2370 = vmatprep.subr.mxu0 0.0
        %2371 = vmatpush1.msra.mxu0 0.0
        %2372 = vmatprep.subr.mxu0 0.0
        %2373 = vmatpush1.msra.mxu0 0.0
        %2374 = vmatprep.subr.mxu0 0.0
        %2375 = vmatpush1.msra.mxu0 0.0
        %2376 = vmatprep.subr.mxu0 0.0
        %2377 = vmatpush1.msra.mxu0 0.0
        %2378 = vmatprep.subr.mxu0 0.0
        %2379 = vmatpush1.msra.mxu0 0.0
        %2380 = vmatprep.subr.mxu0 0.0
        %2381 = vmatpush1.msra.mxu0 %v2348
        %2382 = vmatprep.subr.mxu0 0.0
        %2383 = vmatpush2.msra.mxu0 0.0
        %2384 = vmatprep.subr.mxu0 0.0
        %2385 = vmatpush2.msra.mxu0 0.0
        %2386 = vmatprep.subr.mxu0 0.0
        %2387 = vmatpush2.msra.mxu0 0.0
        %2388 = vmatprep.subr.mxu0 0.0
        %2389 = vmatpush2.msra.mxu0 0.0
        %2390 = vmatprep.subr.mxu0 0.0
        %2391 = vmatpush2.msra.mxu0 0.0
        %2392 = vmatprep.subr.mxu0 0.0
        %2393 = vmatpush2.msra.mxu0 0.0
        %2394 = vmatprep.subr.mxu0 0.0
        %2395 = vmatpush2.msra.mxu0 0.0
        %2396 = vmatprep.subr.mxu0 0.0
        %2397 = vmatpush2.msra.mxu0 0.0
        %2398 = vmatprep.subr.mxu0 0.0
        %2399 = vmatpush2.msra.mxu0 0.0
        %2400 = vmatprep.subr.mxu0 0.0
        %2401 = vmatpush2.msra.mxu0 0.0
        %2402 = vmatprep.subr.mxu0 0.0
        %2403 = vmatpush2.msra.mxu0 0.0
        %2404 = vmatprep.subr.mxu0 0.0
        %2405 = vmatpush2.msra.mxu0 0.0
        %2406 = vmatprep.subr.mxu0 0.0
        %2407 = vmatpush2.msra.mxu0 0.0
        %2408 = vmatprep.subr.mxu0 0.0
        %2409 = vmatpush2.msra.mxu0 0.0
        %2410 = vmatprep.subr.mxu0 0.0
        %2411 = vmatpush2.msra.mxu0 0.0
        %2412 = vmatprep.subr.mxu0 0.0
        %2413 = vmatpush2.msra.mxu0 0.0
        %2414 = vmatprep.mubr.f32.mxu0 0.0
        %2415 = vmatmul.mubr.f32.gmra.mxu0 %v2324
        %v2416 = vpop.f32.mrf.mxu0
        %v2417 = vadd.f32 0.0, %v2416
        %v2418 = vpop.f32.mrf.mxu0
        %2419 = vmatprep.mubr.f32.mxu0 0.0
        %2420 = vmatmul.mubr.f32.gmra.mxu0 %v2327
        %v2421 = vpop.f32.mrf.mxu0
        %v2422 = vadd.f32 0.0, %v2421
        %v2423 = vpop.f32.mrf.mxu0
        %2424 = vmatprep.mubr.f32.mxu0 0.0
        %2425 = vmatmul.mubr.f32.gmra.mxu0 %v2330
        %v2426 = vpop.f32.mrf.mxu0
        %v2427 = vadd.f32 0.0, %v2426
        %v2428 = vpop.f32.mrf.mxu0
        %2429 = vmatprep.mubr.f32.mxu0 0.0
        %2430 = vmatmul.mubr.f32.gmra.mxu0 %v2333
        %v2431 = vpop.f32.mrf.mxu0
        %v2432 = vadd.f32 0.0, %v2431
        %v2433 = vpop.f32.mrf.mxu0
        %2434 = vmatprep.mubr.f32.mxu0 0.0
        %2435 = vmatmul.mubr.f32.gmra.mxu0 %v2336
        %v2436 = vpop.f32.mrf.mxu0
        %v2437 = vadd.f32 0.0, %v2436
        %v2438 = vpop.f32.mrf.mxu0
        %2439 = vmatprep.mubr.f32.mxu0 0.0
        %2440 = vmatmul.mubr.f32.gmra.mxu0 %v2339
        %v2441 = vpop.f32.mrf.mxu0
        %v2442 = vadd.f32 0.0, %v2441
        %v2443 = vpop.f32.mrf.mxu0
        %2444 = vmatprep.mubr.f32.mxu0 0.0
        %2445 = vmatmul.mubr.f32.gmra.mxu0 %v2342
        %v2446 = vpop.f32.mrf.mxu0
        %v2447 = vadd.f32 0.0, %v2446
        %v2448 = vpop.f32.mrf.mxu0
        %2449 = vmatprep.mubr.f32.mxu0 0.0
        %2450 = vmatmul.mubr.f32.gmra.mxu0 %v2345
        %v2451 = vpop.f32.mrf.mxu0
        %v2452 = vadd.f32 0.0, %v2451
        %v2453 = vpop.f32.mrf.mxu0
        %2454 = vdwg.mxu0
        %v2455 = vmul.f32 %v2417, %v2417
        %v2456 = vmul.f32 %v2422, %v2422
        %v2457 = vmul.f32 %v2427, %v2427
        %v2458 = vmul.f32 %v2432, %v2432
        %v2459 = vsub.f32 %v2437, %v2455
        %v2460 = vsub.f32 %v2442, %v2456
        %v2461 = vsub.f32 %v2447, %v2457
        %v2462 = vsub.f32 %v2452, %v2458
        %v2463 = vsub.f32 %v2193, %v2417
        %v2464 = vsub.f32 %v2194, %v2422
        %v2465 = vsub.f32 %v2195, %v2427
        %v2466 = vsub.f32 %v2196, %v2432
        %v2467 = vadd.f32 %v2459, 1e-05
        %v2468 = vadd.f32 %v2460, 1e-05
        %v2469 = vadd.f32 %v2461, 1e-05
        %v2470 = vadd.f32 %v2462, 1e-05
        %v2471 = vrsqrt.pop %v2467
        %v2472 = vrsqrt.pop %v2468
        %v2473 = vrsqrt.pop %v2469
        %v2474 = vrsqrt.pop %v2470
        %v2475 = vmul.f32 %v2463, %v2471
        %v2476 = vmul.f32 %v2464, %v2472
        %v2477 = vmul.f32 %v2465, %v2473
        %v2478 = vmul.f32 %v2466, %v2474
        %v2479 = vld [vmem:[%s21] sm:$0x1]
        %v2481 = vlaneseq
        %v2482 = vshrl.u32 %v2481, 7
        %v2483 = vsub.s32 0, %v2482
        %v2484 = vrot.slane %v2479, %v2483
        %v2486 = vmul.f32 %v2475, %v2484
        %v2487 = vmul.f32 %v2476, %v2484
        %v2488 = vmul.f32 %v2477, %v2484
        %v2489 = vmul.f32 %v2478, %v2484
        %v2490 = vld [vmem:[%s22] sm:$0x1]
        %v2492 = vlaneseq
        %v2493 = vshrl.u32 %v2492, 7
        %v2494 = vsub.s32 0, %v2493
        %v2495 = vrot.slane %v2490, %v2494
        %v2497 = vadd.f32 %v2486, %v2495
        %v2498 = vadd.f32 %v2487, %v2495
        %v2499 = vadd.f32 %v2488, %v2495
        %v2500 = vadd.f32 %v2489, %v2495
        %v2501 = vpack.c.bf16 %v2498, %v2497
        %v2502 = vpack.c.bf16 %v2500, %v2499
        %v2503 = vunpack.c.l.bf16 %v2501
        %v2504 = vunpack.c.h.bf16 %v2501
        %v2505 = vunpack.c.l.bf16 %v2502
        %v2506 = vunpack.c.h.bf16 %v2502
        %v2507 = vlaneseq
        %v2508 = vshrl.u32 %v2507, 7
        %v2509 = vadd.s32 %v2508, 8
        %v2510 = vadd.s32 %v2508, 16
        %v2511 = vadd.s32 %v2508, 24
        %s2512 = smul.u32 %s44, 32
        %v2513 = vstv %s2512
        %v2514 = vadd.s32 %v2508, %v2513
        %v2515 = vadd.s32 %v2509, %v2513
        %v2516 = vadd.s32 %v2510, %v2513
        %v2517 = vadd.s32 %v2511, %v2513
        %vm2518 = vcmp.lt.s32.totalorder %v2514, 100
        %vm2519 = vcmp.lt.s32.totalorder %v2515, 100
        %vm2520 = vcmp.lt.s32.totalorder %v2516, 100
        %vm2521 = vcmp.lt.s32.totalorder %v2517, 100
        %v2522 = vsel %vm2518, 1, 0
        %v2523 = vsel %vm2519, 1, 0
        %v2524 = vsel %vm2520, 1, 0
        %v2525 = vsel %vm2521, 1, 0
        %vm2526 = vcmp.eq.s32.totalorder %v2522, 1
        %vm2527 = vcmp.eq.s32.totalorder %v2523, 1
        %vm2528 = vcmp.eq.s32.totalorder %v2524, 1
        %vm2529 = vcmp.eq.s32.totalorder %v2525, 1
        %v2530 = vsel %vm2526, %v2503, -3.4028235e+38
        %v2531 = vsel %vm2527, %v2504, -3.4028235e+38
        %v2532 = vsel %vm2528, %v2505, -3.4028235e+38
        %v2533 = vsel %vm2529, %v2506, -3.4028235e+38
        %v2534 = vmax.f32 %v2530, %v2531
        %v2535 = vmax.f32 %v2532, %v2533
        %v2536 = vmax.f32 %v2534, %v2535
        %v2537 = vrot.slane %v2536, 4
        %v2538 = vmax.f32 %v2536, %v2537
        %v2539 = vrot.slane %v2538, 2
        %v2540 = vmax.f32 %v2538, %v2539
        %v2541 = vrot.slane %v2540, 1
        %v2542 = vmax.f32 %v2540, %v2541
        %2543 = vst [vmem:[%s796] sm:$0xff] %v2542
        %s2544 = sand.u32 %s582, 1
        %s2545 = scalar_lea.sflag [#allocation3], %s2544
        %s2546 = sand.u32 %s582, 1
        %s2547 = smul.addr %s2546, 16
        %s2548 = scalar_lea.vmem [#allocation2], %s2547
        %s2549 = sand.u32 %s608, 1
        %s2550 = scalar_lea.sflag [#allocation5], %s2549
        %s2551 = sand.u32 %s608, 1
        %s2552 = smul.addr %s2551, 8
        %s2553 = scalar_lea.vmem [#allocation4], %s2552
        // Predicated region
        $region121: #{tpu_custom_call.1} parent=119 // pred_check
          %p2554 = pneg %p592
        $region122: #{tpu_custom_call.1} parent=119 // pred_check_branch
          %2556 = sbr.rel (%p2554) target = $region124
        $region123: #{tpu_custom_call.1} parent=119 // pred_region
          %s2557 = smul.u32 4, %s44
          %s2559 = ssub.s32 256, 256
          %2560 = vsyncadd %s2545, %s2559
          %s2561 = smul.addr %s2557, 64
          %s2562 = scalar_lea.hbm %s25, %s2561
          %s2563 = sshll.u32 %s2548, 4
          %s2564 = int_to_ptr.vmem [resolvable:$true] %s2563
          %2569 = dma.vmem_to_hbm [thread:$0]  %s2564, 256, %s2562, %s2545, 64, 64, 4
        $region124: #{tpu_custom_call.1} parent=119 // pred_fallthru
          _
        // Predicated region
        $region125: #{tpu_custom_call.1} parent=119 // pred_check
          %p2570 = pneg %p618
        $region126: #{tpu_custom_call.1} parent=119 // pred_check_branch
          %2572 = sbr.rel (%p2570) target = $region128
        $region127: #{tpu_custom_call.1} parent=119 // pred_region
          %s2574 = ssub.s32 128, 128
          %2575 = vsyncadd %s2550, %s2574
          %s2576 = smul.addr %s44, 128
          %s2577 = scalar_lea.hbm %s26, %s2576
          %s2579 = sshll.u32 %s2553, 4
          %s2580 = int_to_ptr.vmem [resolvable:$true] %s2579
          %2582 = dma.vmem_to_hbm [thread:$0]  %s2580, 128, %s2577, %s2550
        $region128: #{tpu_custom_call.1} parent=119 // pred_fallthru
          _
      $region120: #{tpu_custom_call.1} parent=5 // pred_fallthru
        _
      %p2583 = scmp.le.s32.totalorder 2, %s39
      // Predicated region
      $region129: #{tpu_custom_call.1} parent=5 // pred_check
        %p2584 = pneg %p2583
      $region130: #{tpu_custom_call.1} parent=5 // pred_check_branch
        %2586 = sbr.rel (%p2584) target = $region132
      $region131: #{tpu_custom_call.1} parent=5 // pred_region
        %s2587 = ssub.s32 %s39, 2
        // Predicated region
        $region133: #{tpu_custom_call.1} parent=131 // pred_check
          %p2588 = pneg %p598
        $region134: #{tpu_custom_call.1} parent=131 // pred_check_branch
          %2590 = sbr.rel (%p2588) target = $region136
        $region135: #{tpu_custom_call.1} parent=131 // pred_region
          %s2591 = sand.u32 %s583, 1
          %s2592 = scalar_lea.sflag [#allocation3], %s2591
          %s2593 = sand.u32 %s583, 1
          %s2594 = smul.addr %s2593, 16
          %s2595 = scalar_lea.vmem [#allocation2], %s2594
          %2596 = dma.done %s2592, 256
        $region136: #{tpu_custom_call.1} parent=131 // pred_fallthru
          _
        // Predicated region
        $region137: #{tpu_custom_call.1} parent=131 // pred_check
          %p2597 = pneg %p624
        $region138: #{tpu_custom_call.1} parent=131 // pred_check_branch
          %2599 = sbr.rel (%p2597) target = $region140
        $region139: #{tpu_custom_call.1} parent=131 // pred_region
          %s2600 = sand.u32 %s609, 1
          %s2601 = scalar_lea.sflag [#allocation5], %s2600
          %s2602 = sand.u32 %s609, 1
          %s2603 = smul.addr %s2602, 8
          %s2604 = scalar_lea.vmem [#allocation4], %s2603
          %2605 = dma.done %s2601, 128
        $region140: #{tpu_custom_call.1} parent=131 // pred_fallthru
          _
      $region132: #{tpu_custom_call.1} parent=5 // pred_fallthru
        _
    $region6: #{tpu_custom_call.1} parent=1 // loop_footer
      %s43 = sadd.s32 1, %s39
    $region7: #{tpu_custom_call.1} parent=1 // loop_footer_branch
      %38 = sbr.rel target = $region3
    $region8: #{tpu_custom_call.1} parent=1 // loop_exit
      _
    %2606 = vsyncpa [#allocation3], 1
    %s2607 = scalar_lea.sflag [#allocation3], 1
    %2608 = vsyncpa %s2607, 1
    %2609 = vsyncpa [#allocation5], 1
    %s2610 = scalar_lea.sflag [#allocation5], 1
    %2611 = vsyncpa %s2610, 1

</llo_original>
